<compile_context>
chip_gen: v7x
topology: tpu7x:2x2x1
jax: 0.10.0
libtpu: 0.0.40
codegen_flags: <defaults>
</compile_context>

<pallas_src>
import jax
import jax.numpy as jnp
from jax import lax
from jax.experimental import pallas as pl
from jax.experimental.pallas import tpu as pltpu


def _round_up(n: int, m: int) -> int:
    return ((n + m - 1) // m) * m


def _make_rnn_kernel(n_layers: int, chunk_t: int, bt: int, hidden_p: int,
                     seq_len: int, needs_mask: bool, unroll: int, compute_dtype):
    """Kernel body for static layer count / time chunk / padded dims."""

    def kernel(*refs):
        # refs = [pre0,
        #         (w_ih_l, b_l) for l in 1..L-1,
        #         w_hh_0..w_hh_{L-1},
        #         w_fc, b_fc,
        #         out, h_scr, seq_scr]
        idx = 0
        pre0_ref = refs[idx]; idx += 1                     # (chunk_t, bt, hidden_p)
        w_ih_refs, b_refs = [None], [None]                 # layer 0 projected in wrapper
        for _ in range(n_layers - 1):
            w_ih_refs.append(refs[idx]); b_refs.append(refs[idx + 1]); idx += 2
        w_hh_refs = [refs[idx + l] for l in range(n_layers)]; idx += n_layers
        w_fc_ref = refs[idx]; b_fc_ref = refs[idx + 1]; idx += 2
        out_ref = refs[idx]; idx += 1                      # (bt, out_p)
        h_scr = refs[idx]                                  # (n_layers, bt, hidden_p)
        seq_scr = refs[idx + 1]                            # (chunk_t, bt, hidden_p)

        tc = pl.program_id(1)
        n_chunks = pl.num_programs(1)

        # h_0 = zeros for every layer (matches torch.zeros(...) in forward()).
        @pl.when(tc == 0)
        def _():
            h_scr[...] = jnp.zeros_like(h_scr)

        if needs_mask:
            valid = jnp.minimum(jnp.int32(seq_len) - tc * chunk_t, chunk_t)

        h = None
        for l in range(n_layers):
            # ---- time-independent half: one big MXU matmul for the whole chunk.
            if l > 0:
                inp = seq_scr[...].reshape(chunk_t * bt, hidden_p)
                pre = (jnp.dot(inp.astype(compute_dtype), w_ih_refs[l][...],
                               preferred_element_type=jnp.float32)
                       + b_refs[l][...])
                seq_scr[...] = pre.reshape(chunk_t, bt, hidden_p)
                pre_ref = seq_scr
            else:
                pre_ref = pre0_ref   # layer-0 projection precomputed in the wrapper

            # ---- serial recurrence: only  h @ W_hh + pre + tanh  per timestep.
            # TODO(synk): hold W_hh resident in the MXU across the chunk via
            # pltpu.matmul_push_rhs / matmul_acc_lhs / matmul_pop (next lever for
            # the 8-row recurrent dot); kept jnp.dot for lowering portability.
            h = h_scr[l]

            def step(t, h, _l=l, _pre_ref=pre_ref):
                h_new = jnp.tanh(
                    _pre_ref[t]
                    + jnp.dot(h.astype(compute_dtype), w_hh_refs[_l][...],
                              preferred_element_type=jnp.float32))
                if needs_mask:
                    h_new = jnp.where(t < valid, h_new, h)   # freeze past tail
                if _l + 1 < n_layers:
                    seq_scr[t] = h_new        # input sequence for the next layer
                return h_new

            h = lax.fori_loop(0, chunk_t, step, h, unroll=unroll)
            h_scr[l] = h

        # Final Linear on the last (valid) timestep's top-layer hidden state.
        h_top = h

        @pl.when(tc == n_chunks - 1)
        def _():
            out_ref[...] = (jnp.dot(h_top.astype(compute_dtype), w_fc_ref[...],
                                    preferred_element_type=jnp.float32)
                            + b_fc_ref[...]).astype(out_ref.dtype)

    return kernel


def rnn_model_forward(x, params, *, time_chunk: int = 64, unroll: int = 8,
                      compute_dtype=jnp.float32):
    """x: (batch, seq, input_size) float32 (PyTorch batch_first layout)."""
    batch, seq_len, input_size = x.shape
    layers = params["layers"]
    n_layers = len(layers)
    hidden = layers[0][1].shape[0]                 # w_hh is (hidden, hidden)
    output_size = params["w_fc"].shape[1]

    BT = 8                                          # batch tile (sublane multiple)
    batch_p = _round_up(batch, BT)
    n_btiles = batch_p // BT
    hidden_p = _round_up(hidden, 128)
    out_p = _round_up(output_size, 128)

    # Fixed chunk size + masked tail (no divisor-of-seq_len collapse).
    chunk_t = min(time_chunk, seq_len)
    n_chunks = int(pl.cdiv(seq_len, chunk_t))
    seq_p = n_chunks * chunk_t
    needs_mask = (seq_p != seq_len)
    unroll = max(1, min(unroll, chunk_t))

    # Layer-0 input projection hoisted to the wrapper: one dense XLA matmul, so the
    # kernel streams hidden_p-lane-dense pre-activations instead of padded-zero x.
    w_ih0, _, b_ih0, b_hh0 = layers[0]
    pre0 = jnp.einsum("bti,ih->bth", x, w_ih0) + (b_ih0 + b_hh0).reshape(1, 1, hidden)
    pre0 = jnp.transpose(pre0, (1, 0, 2))                           # time-major
    pre0 = jnp.pad(pre0, ((0, seq_p - seq_len), (0, batch_p - batch),
                          (0, hidden_p - hidden)))

    # Padded per-layer weights (zero padding is exact, see header comment).
    flat = []
    for l, (w_ih, w_hh, b_ih, b_hh) in enumerate(layers):
        if l >= 1:
            w_ih_p = jnp.zeros((hidden_p, hidden_p), compute_dtype)
            w_ih_p = w_ih_p.at[:hidden, :hidden].set(w_ih.astype(compute_dtype))
            b_p = jnp.zeros((1, hidden_p), jnp.float32)
            b_p = b_p.at[:, :hidden].set((b_ih + b_hh).reshape(1, hidden))
            flat += [w_ih_p, b_p]
    for (_, w_hh, _, _) in layers:
        w_hh_p = jnp.zeros((hidden_p, hidden_p), compute_dtype)
        w_hh_p = w_hh_p.at[:hidden, :hidden].set(w_hh.astype(compute_dtype))
        flat.append(w_hh_p)
    w_fc_p = jnp.zeros((hidden_p, out_p), compute_dtype)
    w_fc_p = w_fc_p.at[:hidden, :output_size].set(params["w_fc"].astype(compute_dtype))
    b_fc_p = jnp.zeros((1, out_p), jnp.float32)
    b_fc_p = b_fc_p.at[:, :output_size].set(params["b_fc"].reshape(1, output_size))
    flat += [w_fc_p, b_fc_p]

    kernel = _make_rnn_kernel(n_layers, chunk_t, BT, hidden_p, seq_len,
                              needs_mask, unroll, compute_dtype)

    def _const_spec(arr):
        return pl.BlockSpec(arr.shape, lambda b, t: (0, 0))   # weights: resident

    in_specs = [pl.BlockSpec((chunk_t, BT, hidden_p), lambda b, t: (t, b, 0))]
    in_specs += [_const_spec(a) for a in flat]
    out_spec = pl.BlockSpec((BT, out_p), lambda b, t: (b, 0))

    # Exact VMEM accounting: streamed pre0 chunk (double-buffered) + resident
    # weights (Pallas double-buffers them by default) + output block + scratch.
    itemsize = 4
    weight_bytes = sum(int(a.size) * a.dtype.itemsize for a in flat)
    chunk_bytes = chunk_t * BT * hidden_p * itemsize
    need = (2 * chunk_bytes                          # pre0 chunk, double buffered
            + 2 * weight_bytes                       # resident weights (2 buffers)
            + 2 * BT * out_p * itemsize              # output block
            + n_layers * BT * hidden_p * itemsize    # h carry scratch
            + chunk_bytes)                           # per-chunk layer-output scratch
    # Cap kept v7x-safe (64 MiB physical VMEM); on v5e/v6e (128 MiB) it could be
    # raised further for bigger hidden sizes / chunks.
    vmem_limit = int(min(max(need + (2 << 20), 16 << 20), 48 << 20))

    out = pl.pallas_call(
        kernel,
        out_shape=jax.ShapeDtypeStruct((batch_p, out_p), jnp.float32),
        grid_spec=pltpu.PrefetchScalarGridSpec(
            num_scalar_prefetch=0,
            grid=(n_btiles, n_chunks),
            in_specs=in_specs,
            out_specs=out_spec,
            scratch_shapes=[
                pltpu.VMEM((n_layers, BT, hidden_p), jnp.float32),   # h carry
                pltpu.VMEM((chunk_t, BT, hidden_p), jnp.float32),    # layer seq buffer
            ],
        ),
        compiler_params=pltpu.CompilerParams(
            # batch tiles are independent -> "parallel" (2nd TC on v7x);
            # time recurrence is sequential -> "arbitrary".
            dimension_semantics=("parallel", "arbitrary"),
            vmem_limit_bytes=vmem_limit,
        ),
    )(pre0, *flat)

    return out[:batch, :output_size]


def init_params(key, input_size, hidden_size, output_size, n_layers):
    """Deterministic init mimicking PyTorch's U(-1/sqrt(H), 1/sqrt(H)).

    Weights are stored pre-transposed: w_ih (in, hidden), w_hh (hidden, hidden),
    biases (1, hidden); w_fc (hidden, out), b_fc (1, out).
    """
    k = 1.0 / jnp.sqrt(jnp.float32(hidden_size))
    layers = []
    for layer in range(n_layers):
        in_sz = input_size if layer == 0 else hidden_size
        key, k1, k2, k3, k4 = jax.random.split(key, 5)
        w_ih = jax.random.uniform(k1, (in_sz, hidden_size), jnp.float32, -k, k)
        w_hh = jax.random.uniform(k2, (hidden_size, hidden_size), jnp.float32, -k, k)
        b_ih = jax.random.uniform(k3, (1, hidden_size), jnp.float32, -k, k)
        b_hh = jax.random.uniform(k4, (1, hidden_size), jnp.float32, -k, k)
        layers.append((w_ih, w_hh, b_ih, b_hh))
    key, k5, k6 = jax.random.split(key, 3)
    kf = 1.0 / jnp.sqrt(jnp.float32(hidden_size))
    w_fc = jax.random.uniform(k5, (hidden_size, output_size), jnp.float32, -kf, kf)
    b_fc = jax.random.uniform(k6, (1, output_size), jnp.float32, -kf, kf)
    return {"layers": layers, "w_fc": w_fc, "b_fc": b_fc}


def rnn_model_reference(x, params):
    """Pure-JAX reference replicating nn.RNN(batch_first=True) + last-step Linear."""
    batch, seq_len, _ = x.shape
    hidden = params["layers"][0][1].shape[0]
    h_seq = x
    for (w_ih, w_hh, b_ih, b_hh) in params["layers"]:
        h = jnp.zeros((batch, hidden), jnp.float32)
        outs = []
        for t in range(seq_len):
            h = jnp.tanh(h_seq[:, t] @ w_ih + b_ih + h @ w_hh + b_hh)
            outs.append(h)
        h_seq = jnp.stack(outs, axis=1)
    return h_seq[:, -1] @ params["w_fc"] + params["b_fc"]


if __name__ == "__main__":
    batch = 2
    seq_len = 8
    input_size = 4
    hidden_size = 32
    output_size = 3
    n_layers = 2

    key = jax.random.PRNGKey(0)
    key, xk = jax.random.split(key)
    x = jax.random.normal(xk, (batch, seq_len, input_size), jnp.float32)

    params = init_params(key, input_size, hidden_size, output_size, n_layers)

    out = rnn_model_forward(x, params)
    out = jax.block_until_ready(out)

    ref = rnn_model_reference(x, params)
    assert out.shape == (batch, output_size)
    assert jnp.allclose(out, ref, atol=1e-4, rtol=1e-4), (out, ref)

    print("KERNEL_OK")
</pallas_src>

<mosaic_0001>
module attributes {stable_mosaic.version = 11 : i64} {
  func.func @kernel(%arg0: i32, %arg1: i32, %arg2: memref<8x8x128xf32, #tpu.memory_space<vmem>>, %arg3: memref<128x128xf32, #tpu.memory_space<vmem>>, %arg4: memref<1x128xf32, #tpu.memory_space<vmem>>, %arg5: memref<128x128xf32, #tpu.memory_space<vmem>>, %arg6: memref<128x128xf32, #tpu.memory_space<vmem>>, %arg7: memref<128x128xf32, #tpu.memory_space<vmem>>, %arg8: memref<1x128xf32, #tpu.memory_space<vmem>>, %arg9: memref<8x128xf32, #tpu.memory_space<vmem>>, %arg10: memref<2x8x128xf32, #tpu.memory_space<vmem>>, %arg11: memref<8x8x128xf32, #tpu.memory_space<vmem>>) attributes {dimension_semantics = [#tpu.dimension_semantics<parallel>, #tpu.dimension_semantics<arbitrary>], iteration_bounds = array<i64: 1, 1>, scalar_prefetch = 0 : i64, scratch_operands = 2 : i64, tpu.core_type = #tpu.core_type<tc>, window_params = [{transform_indices = @transform_0, window_bounds = array<i64: 8, 8, 128>}, {pipeline_mode = #tpu.pipeline_mode<synchronous>, transform_indices = @transform_1, window_bounds = array<i64: 128, 128>}, {pipeline_mode = #tpu.pipeline_mode<synchronous>, transform_indices = @transform_2, window_bounds = array<i64: 1, 128>}, {pipeline_mode = #tpu.pipeline_mode<synchronous>, transform_indices = @transform_3, window_bounds = array<i64: 128, 128>}, {pipeline_mode = #tpu.pipeline_mode<synchronous>, transform_indices = @transform_4, window_bounds = array<i64: 128, 128>}, {pipeline_mode = #tpu.pipeline_mode<synchronous>, transform_indices = @transform_5, window_bounds = array<i64: 128, 128>}, {pipeline_mode = #tpu.pipeline_mode<synchronous>, transform_indices = @transform_6, window_bounds = array<i64: 1, 128>}, {transform_indices = @transform_7, window_bounds = array<i64: 8, 128>}]} {
    %c0_i32 = arith.constant 0 : i32
    %0 = arith.cmpi eq, %arg1, %c0_i32 : i32
    %1 = arith.extui %0 : i1 to i32
    %c0_i32_0 = arith.constant 0 : i32
    %2 = arith.cmpi ne, %1, %c0_i32_0 : i32
    scf.if %2 {
      %cst_129 = arith.constant 0.000000e+00 : f32
      %169 = vector.broadcast %cst_129 : f32 to vector<2x8x128xf32>
      %c0_130 = arith.constant 0 : index
      %c0_131 = arith.constant 0 : index
      %c0_132 = arith.constant 0 : index
      %170 = vector.load %arg10[%c0_130, %c0_131, %c0_132] : memref<2x8x128xf32, #tpu.memory_space<vmem>>, vector<2x8x128xf32>
      tpu.vector_store %arg10[%c0_130, %c0_131, %c0_132], %169 {strides = array<i32>} : memref<2x8x128xf32, #tpu.memory_space<vmem>>, vector<2x8x128xf32>,
    } else {
    }
    %c0 = arith.constant 0 : index
    %c0_1 = arith.constant 0 : index
    %c0_2 = arith.constant 0 : index
    %3 = vector.load %arg10[%c0, %c0_1, %c0_2] : memref<2x8x128xf32, #tpu.memory_space<vmem>>, vector<1x8x128xf32>
    %4 = vector.shape_cast %3 : vector<1x8x128xf32> to vector<8x128xf32>
    %c0_i32_3 = arith.constant 0 : i32
    %5 = arith.index_cast %c0_i32_3 : i32 to index
    %c0_4 = arith.constant 0 : index
    %c0_5 = arith.constant 0 : index
    %6 = vector.load %arg2[%5, %c0_4, %c0_5] : memref<8x8x128xf32, #tpu.memory_space<vmem>>, vector<1x8x128xf32>
    %7 = vector.shape_cast %6 : vector<1x8x128xf32> to vector<8x128xf32>
    %c0_6 = arith.constant 0 : index
    %c0_7 = arith.constant 0 : index
    %8 = vector.load %arg5[%c0_6, %c0_7] : memref<128x128xf32, #tpu.memory_space<vmem>>, vector<128x128xf32>
    %cst = arith.constant dense<0.000000e+00> : vector<8x128xf32>
    %9 = tpu.matmul %4, %8, %cst {dimension_numbers = #tpu.dot_dimension_numbers<[1], [0], [0], [1], [0, 0, 1, 1], [], []>} : vector<8x128xf32>, vector<128x128xf32>, vector<8x128xf32> -> vector<8x128xf32>
    %10 = arith.addf %7, %9 : vector<8x128xf32>
    %11 = math.tanh %10 : vector<8x128xf32>
    %12 = arith.index_cast %c0_i32_3 : i32 to index
    %c0_8 = arith.constant 0 : index
    %c0_9 = arith.constant 0 : index
    %13 = vector.load %arg11[%12, %c0_8, %c0_9] : memref<8x8x128xf32, #tpu.memory_space<vmem>>, vector<1x8x128xf32>
    %14 = vector.shape_cast %13 : vector<1x8x128xf32> to vector<8x128xf32>
    %15 = vector.shape_cast %11 : vector<8x128xf32> to vector<1x8x128xf32>
    tpu.vector_store %arg11[%12, %c0_8, %c0_9], %15 {strides = array<i32>} : memref<8x8x128xf32, #tpu.memory_space<vmem>>, vector<1x8x128xf32>,
    %c1_i32 = arith.constant 1 : i32
    %16 = arith.index_cast %c1_i32 : i32 to index
    %c0_10 = arith.constant 0 : index
    %c0_11 = arith.constant 0 : index
    %17 = vector.load %arg2[%16, %c0_10, %c0_11] : memref<8x8x128xf32, #tpu.memory_space<vmem>>, vector<1x8x128xf32>
    %18 = vector.shape_cast %17 : vector<1x8x128xf32> to vector<8x128xf32>
    %c0_12 = arith.constant 0 : index
    %c0_13 = arith.constant 0 : index
    %19 = vector.load %arg5[%c0_12, %c0_13] : memref<128x128xf32, #tpu.memory_space<vmem>>, vector<128x128xf32>
    %cst_14 = arith.constant dense<0.000000e+00> : vector<8x128xf32>
    %20 = tpu.matmul %11, %19, %cst_14 {dimension_numbers = #tpu.dot_dimension_numbers<[1], [0], [0], [1], [0, 0, 1, 1], [], []>} : vector<8x128xf32>, vector<128x128xf32>, vector<8x128xf32> -> vector<8x128xf32>
    %21 = arith.addf %18, %20 : vector<8x128xf32>
    %22 = math.tanh %21 : vector<8x128xf32>
    %23 = arith.index_cast %c1_i32 : i32 to index
    %c0_15 = arith.constant 0 : index
    %c0_16 = arith.constant 0 : index
    %24 = vector.load %arg11[%23, %c0_15, %c0_16] : memref<8x8x128xf32, #tpu.memory_space<vmem>>, vector<1x8x128xf32>
    %25 = vector.shape_cast %24 : vector<1x8x128xf32> to vector<8x128xf32>
    %26 = vector.shape_cast %22 : vector<8x128xf32> to vector<1x8x128xf32>
    tpu.vector_store %arg11[%23, %c0_15, %c0_16], %26 {strides = array<i32>} : memref<8x8x128xf32, #tpu.memory_space<vmem>>, vector<1x8x128xf32>,
    %c2_i32 = arith.constant 2 : i32
    %27 = arith.index_cast %c2_i32 : i32 to index
    %c0_17 = arith.constant 0 : index
    %c0_18 = arith.constant 0 : index
    %28 = vector.load %arg2[%27, %c0_17, %c0_18] : memref<8x8x128xf32, #tpu.memory_space<vmem>>, vector<1x8x128xf32>
    %29 = vector.shape_cast %28 : vector<1x8x128xf32> to vector<8x128xf32>
    %c0_19 = arith.constant 0 : index
    %c0_20 = arith.constant 0 : index
    %30 = vector.load %arg5[%c0_19, %c0_20] : memref<128x128xf32, #tpu.memory_space<vmem>>, vector<128x128xf32>
    %cst_21 = arith.constant dense<0.000000e+00> : vector<8x128xf32>
    %31 = tpu.matmul %22, %30, %cst_21 {dimension_numbers = #tpu.dot_dimension_numbers<[1], [0], [0], [1], [0, 0, 1, 1], [], []>} : vector<8x128xf32>, vector<128x128xf32>, vector<8x128xf32> -> vector<8x128xf32>
    %32 = arith.addf %29, %31 : vector<8x128xf32>
    %33 = math.tanh %32 : vector<8x128xf32>
    %34 = arith.index_cast %c2_i32 : i32 to index
    %c0_22 = arith.constant 0 : index
    %c0_23 = arith.constant 0 : index
    %35 = vector.load %arg11[%34, %c0_22, %c0_23] : memref<8x8x128xf32, #tpu.memory_space<vmem>>, vector<1x8x128xf32>
    %36 = vector.shape_cast %35 : vector<1x8x128xf32> to vector<8x128xf32>
    %37 = vector.shape_cast %33 : vector<8x128xf32> to vector<1x8x128xf32>
    tpu.vector_store %arg11[%34, %c0_22, %c0_23], %37 {strides = array<i32>} : memref<8x8x128xf32, #tpu.memory_space<vmem>>, vector<1x8x128xf32>,
    %c3_i32 = arith.constant 3 : i32
    %38 = arith.index_cast %c3_i32 : i32 to index
    %c0_24 = arith.constant 0 : index
    %c0_25 = arith.constant 0 : index
    %39 = vector.load %arg2[%38, %c0_24, %c0_25] : memref<8x8x128xf32, #tpu.memory_space<vmem>>, vector<1x8x128xf32>
    %40 = vector.shape_cast %39 : vector<1x8x128xf32> to vector<8x128xf32>
    %c0_26 = arith.constant 0 : index
    %c0_27 = arith.constant 0 : index
    %41 = vector.load %arg5[%c0_26, %c0_27] : memref<128x128xf32, #tpu.memory_space<vmem>>, vector<128x128xf32>
    %cst_28 = arith.constant dense<0.000000e+00> : vector<8x128xf32>
    %42 = tpu.matmul %33, %41, %cst_28 {dimension_numbers = #tpu.dot_dimension_numbers<[1], [0], [0], [1], [0, 0, 1, 1], [], []>} : vector<8x128xf32>, vector<128x128xf32>, vector<8x128xf32> -> vector<8x128xf32>
    %43 = arith.addf %40, %42 : vector<8x128xf32>
    %44 = math.tanh %43 : vector<8x128xf32>
    %45 = arith.index_cast %c3_i32 : i32 to index
    %c0_29 = arith.constant 0 : index
    %c0_30 = arith.constant 0 : index
    %46 = vector.load %arg11[%45, %c0_29, %c0_30] : memref<8x8x128xf32, #tpu.memory_space<vmem>>, vector<1x8x128xf32>
    %47 = vector.shape_cast %46 : vector<1x8x128xf32> to vector<8x128xf32>
    %48 = vector.shape_cast %44 : vector<8x128xf32> to vector<1x8x128xf32>
    tpu.vector_store %arg11[%45, %c0_29, %c0_30], %48 {strides = array<i32>} : memref<8x8x128xf32, #tpu.memory_space<vmem>>, vector<1x8x128xf32>,
    %c4_i32 = arith.constant 4 : i32
    %49 = arith.index_cast %c4_i32 : i32 to index
    %c0_31 = arith.constant 0 : index
    %c0_32 = arith.constant 0 : index
    %50 = vector.load %arg2[%49, %c0_31, %c0_32] : memref<8x8x128xf32, #tpu.memory_space<vmem>>, vector<1x8x128xf32>
    %51 = vector.shape_cast %50 : vector<1x8x128xf32> to vector<8x128xf32>
    %c0_33 = arith.constant 0 : index
    %c0_34 = arith.constant 0 : index
    %52 = vector.load %arg5[%c0_33, %c0_34] : memref<128x128xf32, #tpu.memory_space<vmem>>, vector<128x128xf32>
    %cst_35 = arith.constant dense<0.000000e+00> : vector<8x128xf32>
    %53 = tpu.matmul %44, %52, %cst_35 {dimension_numbers = #tpu.dot_dimension_numbers<[1], [0], [0], [1], [0, 0, 1, 1], [], []>} : vector<8x128xf32>, vector<128x128xf32>, vector<8x128xf32> -> vector<8x128xf32>
    %54 = arith.addf %51, %53 : vector<8x128xf32>
    %55 = math.tanh %54 : vector<8x128xf32>
    %56 = arith.index_cast %c4_i32 : i32 to index
    %c0_36 = arith.constant 0 : index
    %c0_37 = arith.constant 0 : index
    %57 = vector.load %arg11[%56, %c0_36, %c0_37] : memref<8x8x128xf32, #tpu.memory_space<vmem>>, vector<1x8x128xf32>
    %58 = vector.shape_cast %57 : vector<1x8x128xf32> to vector<8x128xf32>
    %59 = vector.shape_cast %55 : vector<8x128xf32> to vector<1x8x128xf32>
    tpu.vector_store %arg11[%56, %c0_36, %c0_37], %59 {strides = array<i32>} : memref<8x8x128xf32, #tpu.memory_space<vmem>>, vector<1x8x128xf32>,
    %c5_i32 = arith.constant 5 : i32
    %60 = arith.index_cast %c5_i32 : i32 to index
    %c0_38 = arith.constant 0 : index
    %c0_39 = arith.constant 0 : index
    %61 = vector.load %arg2[%60, %c0_38, %c0_39] : memref<8x8x128xf32, #tpu.memory_space<vmem>>, vector<1x8x128xf32>
    %62 = vector.shape_cast %61 : vector<1x8x128xf32> to vector<8x128xf32>
    %c0_40 = arith.constant 0 : index
    %c0_41 = arith.constant 0 : index
    %63 = vector.load %arg5[%c0_40, %c0_41] : memref<128x128xf32, #tpu.memory_space<vmem>>, vector<128x128xf32>
    %cst_42 = arith.constant dense<0.000000e+00> : vector<8x128xf32>
    %64 = tpu.matmul %55, %63, %cst_42 {dimension_numbers = #tpu.dot_dimension_numbers<[1], [0], [0], [1], [0, 0, 1, 1], [], []>} : vector<8x128xf32>, vector<128x128xf32>, vector<8x128xf32> -> vector<8x128xf32>
    %65 = arith.addf %62, %64 : vector<8x128xf32>
    %66 = math.tanh %65 : vector<8x128xf32>
    %67 = arith.index_cast %c5_i32 : i32 to index
    %c0_43 = arith.constant 0 : index
    %c0_44 = arith.constant 0 : index
    %68 = vector.load %arg11[%67, %c0_43, %c0_44] : memref<8x8x128xf32, #tpu.memory_space<vmem>>, vector<1x8x128xf32>
    %69 = vector.shape_cast %68 : vector<1x8x128xf32> to vector<8x128xf32>
    %70 = vector.shape_cast %66 : vector<8x128xf32> to vector<1x8x128xf32>
    tpu.vector_store %arg11[%67, %c0_43, %c0_44], %70 {strides = array<i32>} : memref<8x8x128xf32, #tpu.memory_space<vmem>>, vector<1x8x128xf32>,
    %c6_i32 = arith.constant 6 : i32
    %71 = arith.index_cast %c6_i32 : i32 to index
    %c0_45 = arith.constant 0 : index
    %c0_46 = arith.constant 0 : index
    %72 = vector.load %arg2[%71, %c0_45, %c0_46] : memref<8x8x128xf32, #tpu.memory_space<vmem>>, vector<1x8x128xf32>
    %73 = vector.shape_cast %72 : vector<1x8x128xf32> to vector<8x128xf32>
    %c0_47 = arith.constant 0 : index
    %c0_48 = arith.constant 0 : index
    %74 = vector.load %arg5[%c0_47, %c0_48] : memref<128x128xf32, #tpu.memory_space<vmem>>, vector<128x128xf32>
    %cst_49 = arith.constant dense<0.000000e+00> : vector<8x128xf32>
    %75 = tpu.matmul %66, %74, %cst_49 {dimension_numbers = #tpu.dot_dimension_numbers<[1], [0], [0], [1], [0, 0, 1, 1], [], []>} : vector<8x128xf32>, vector<128x128xf32>, vector<8x128xf32> -> vector<8x128xf32>
    %76 = arith.addf %73, %75 : vector<8x128xf32>
    %77 = math.tanh %76 : vector<8x128xf32>
    %78 = arith.index_cast %c6_i32 : i32 to index
    %c0_50 = arith.constant 0 : index
    %c0_51 = arith.constant 0 : index
    %79 = vector.load %arg11[%78, %c0_50, %c0_51] : memref<8x8x128xf32, #tpu.memory_space<vmem>>, vector<1x8x128xf32>
    %80 = vector.shape_cast %79 : vector<1x8x128xf32> to vector<8x128xf32>
    %81 = vector.shape_cast %77 : vector<8x128xf32> to vector<1x8x128xf32>
    tpu.vector_store %arg11[%78, %c0_50, %c0_51], %81 {strides = array<i32>} : memref<8x8x128xf32, #tpu.memory_space<vmem>>, vector<1x8x128xf32>,
    %c7_i32 = arith.constant 7 : i32
    %82 = arith.index_cast %c7_i32 : i32 to index
    %c0_52 = arith.constant 0 : index
    %c0_53 = arith.constant 0 : index
    %83 = vector.load %arg2[%82, %c0_52, %c0_53] : memref<8x8x128xf32, #tpu.memory_space<vmem>>, vector<1x8x128xf32>
    %84 = vector.shape_cast %83 : vector<1x8x128xf32> to vector<8x128xf32>
    %c0_54 = arith.constant 0 : index
    %c0_55 = arith.constant 0 : index
    %85 = vector.load %arg5[%c0_54, %c0_55] : memref<128x128xf32, #tpu.memory_space<vmem>>, vector<128x128xf32>
    %cst_56 = arith.constant dense<0.000000e+00> : vector<8x128xf32>
    %86 = tpu.matmul %77, %85, %cst_56 {dimension_numbers = #tpu.dot_dimension_numbers<[1], [0], [0], [1], [0, 0, 1, 1], [], []>} : vector<8x128xf32>, vector<128x128xf32>, vector<8x128xf32> -> vector<8x128xf32>
    %87 = arith.addf %84, %86 : vector<8x128xf32>
    %88 = math.tanh %87 : vector<8x128xf32>
    %89 = arith.index_cast %c7_i32 : i32 to index
    %c0_57 = arith.constant 0 : index
    %c0_58 = arith.constant 0 : index
    %90 = vector.load %arg11[%89, %c0_57, %c0_58] : memref<8x8x128xf32, #tpu.memory_space<vmem>>, vector<1x8x128xf32>
    %91 = vector.shape_cast %90 : vector<1x8x128xf32> to vector<8x128xf32>
    %92 = vector.shape_cast %88 : vector<8x128xf32> to vector<1x8x128xf32>
    tpu.vector_store %arg11[%89, %c0_57, %c0_58], %92 {strides = array<i32>} : memref<8x8x128xf32, #tpu.memory_space<vmem>>, vector<1x8x128xf32>,
    %c8_i32 = arith.constant 8 : i32
    %c0_59 = arith.constant 0 : index
    %c0_60 = arith.constant 0 : index
    %c0_61 = arith.constant 0 : index
    %93 = vector.load %arg10[%c0_59, %c0_60, %c0_61] : memref<2x8x128xf32, #tpu.memory_space<vmem>>, vector<1x8x128xf32>
    %94 = vector.shape_cast %93 : vector<1x8x128xf32> to vector<8x128xf32>
    %95 = vector.shape_cast %88 : vector<8x128xf32> to vector<1x8x128xf32>
    tpu.vector_store %arg10[%c0_59, %c0_60, %c0_61], %95 {strides = array<i32>} : memref<2x8x128xf32, #tpu.memory_space<vmem>>, vector<1x8x128xf32>,
    %c0_62 = arith.constant 0 : index
    %c0_63 = arith.constant 0 : index
    %c0_64 = arith.constant 0 : index
    %96 = vector.load %arg11[%c0_62, %c0_63, %c0_64] : memref<8x8x128xf32, #tpu.memory_space<vmem>>, vector<8x8x128xf32>
    %97 = vector.shape_cast %96 : vector<8x8x128xf32> to vector<64x128xf32>
    %c0_65 = arith.constant 0 : index
    %c0_66 = arith.constant 0 : index
    %98 = vector.load %arg3[%c0_65, %c0_66] : memref<128x128xf32, #tpu.memory_space<vmem>>, vector<128x128xf32>
    %cst_67 = arith.constant dense<0.000000e+00> : vector<64x128xf32>
    %99 = tpu.matmul %97, %98, %cst_67 {dimension_numbers = #tpu.dot_dimension_numbers<[1], [0], [0], [1], [0, 0, 1, 1], [], []>} : vector<64x128xf32>, vector<128x128xf32>, vector<64x128xf32> -> vector<64x128xf32>
    %c0_68 = arith.constant 0 : index
    %c0_69 = arith.constant 0 : index
    %100 = vector.load %arg4[%c0_68, %c0_69] : memref<1x128xf32, #tpu.memory_space<vmem>>, vector<1x128xf32>
    %101 = vector.broadcast %100 : vector<1x128xf32> to vector<64x128xf32>
    %102 = arith.addf %99, %101 : vector<64x128xf32>
    %103 = vector.shape_cast %102 : vector<64x128xf32> to vector<8x8x128xf32>
    %c0_70 = arith.constant 0 : index
    %c0_71 = arith.constant 0 : index
    %c0_72 = arith.constant 0 : index
    %104 = vector.load %arg11[%c0_70, %c0_71, %c0_72] : memref<8x8x128xf32, #tpu.memory_space<vmem>>, vector<8x8x128xf32>
    tpu.vector_store %arg11[%c0_70, %c0_71, %c0_72], %103 {strides = array<i32>} : memref<8x8x128xf32, #tpu.memory_space<vmem>>, vector<8x8x128xf32>,
    %c1 = arith.constant 1 : index
    %c0_73 = arith.constant 0 : index
    %c0_74 = arith.constant 0 : index
    %105 = vector.load %arg10[%c1, %c0_73, %c0_74] : memref<2x8x128xf32, #tpu.memory_space<vmem>>, vector<1x8x128xf32>
    %106 = vector.shape_cast %105 : vector<1x8x128xf32> to vector<8x128xf32>
    %c0_i32_75 = arith.constant 0 : i32
    %107 = arith.index_cast %c0_i32_75 : i32 to index
    %c0_76 = arith.constant 0 : index
    %c0_77 = arith.constant 0 : index
    %108 = vector.load %arg11[%107, %c0_76, %c0_77] : memref<8x8x128xf32, #tpu.memory_space<vmem>>, vector<1x8x128xf32>
    %109 = vector.shape_cast %108 : vector<1x8x128xf32> to vector<8x128xf32>
    %c0_78 = arith.constant 0 : index
    %c0_79 = arith.constant 0 : index
    %110 = vector.load %arg6[%c0_78, %c0_79] : memref<128x128xf32, #tpu.memory_space<vmem>>, vector<128x128xf32>
    %cst_80 = arith.constant dense<0.000000e+00> : vector<8x128xf32>
    %111 = tpu.matmul %106, %110, %cst_80 {dimension_numbers = #tpu.dot_dimension_numbers<[1], [0], [0], [1], [0, 0, 1, 1], [], []>} : vector<8x128xf32>, vector<128x128xf32>, vector<8x128xf32> -> vector<8x128xf32>
    %112 = arith.addf %109, %111 : vector<8x128xf32>
    %113 = math.tanh %112 : vector<8x128xf32>
    %c1_i32_81 = arith.constant 1 : i32
    %114 = arith.index_cast %c1_i32_81 : i32 to index
    %c0_82 = arith.constant 0 : index
    %c0_83 = arith.constant 0 : index
    %115 = vector.load %arg11[%114, %c0_82, %c0_83] : memref<8x8x128xf32, #tpu.memory_space<vmem>>, vector<1x8x128xf32>
    %116 = vector.shape_cast %115 : vector<1x8x128xf32> to vector<8x128xf32>
    %c0_84 = arith.constant 0 : index
    %c0_85 = arith.constant 0 : index
    %117 = vector.load %arg6[%c0_84, %c0_85] : memref<128x128xf32, #tpu.memory_space<vmem>>, vector<128x128xf32>
    %cst_86 = arith.constant dense<0.000000e+00> : vector<8x128xf32>
    %118 = tpu.matmul %113, %117, %cst_86 {dimension_numbers = #tpu.dot_dimension_numbers<[1], [0], [0], [1], [0, 0, 1, 1], [], []>} : vector<8x128xf32>, vector<128x128xf32>, vector<8x128xf32> -> vector<8x128xf32>
    %119 = arith.addf %116, %118 : vector<8x128xf32>
    %120 = math.tanh %119 : vector<8x128xf32>
    %c2_i32_87 = arith.constant 2 : i32
    %121 = arith.index_cast %c2_i32_87 : i32 to index
    %c0_88 = arith.constant 0 : index
    %c0_89 = arith.constant 0 : index
    %122 = vector.load %arg11[%121, %c0_88, %c0_89] : memref<8x8x128xf32, #tpu.memory_space<vmem>>, vector<1x8x128xf32>
    %123 = vector.shape_cast %122 : vector<1x8x128xf32> to vector<8x128xf32>
    %c0_90 = arith.constant 0 : index
    %c0_91 = arith.constant 0 : index
    %124 = vector.load %arg6[%c0_90, %c0_91] : memref<128x128xf32, #tpu.memory_space<vmem>>, vector<128x128xf32>
    %cst_92 = arith.constant dense<0.000000e+00> : vector<8x128xf32>
    %125 = tpu.matmul %120, %124, %cst_92 {dimension_numbers = #tpu.dot_dimension_numbers<[1], [0], [0], [1], [0, 0, 1, 1], [], []>} : vector<8x128xf32>, vector<128x128xf32>, vector<8x128xf32> -> vector<8x128xf32>
    %126 = arith.addf %123, %125 : vector<8x128xf32>
    %127 = math.tanh %126 : vector<8x128xf32>
    %c3_i32_93 = arith.constant 3 : i32
    %128 = arith.index_cast %c3_i32_93 : i32 to index
    %c0_94 = arith.constant 0 : index
    %c0_95 = arith.constant 0 : index
    %129 = vector.load %arg11[%128, %c0_94, %c0_95] : memref<8x8x128xf32, #tpu.memory_space<vmem>>, vector<1x8x128xf32>
    %130 = vector.shape_cast %129 : vector<1x8x128xf32> to vector<8x128xf32>
    %c0_96 = arith.constant 0 : index
    %c0_97 = arith.constant 0 : index
    %131 = vector.load %arg6[%c0_96, %c0_97] : memref<128x128xf32, #tpu.memory_space<vmem>>, vector<128x128xf32>
    %cst_98 = arith.constant dense<0.000000e+00> : vector<8x128xf32>
    %132 = tpu.matmul %127, %131, %cst_98 {dimension_numbers = #tpu.dot_dimension_numbers<[1], [0], [0], [1], [0, 0, 1, 1], [], []>} : vector<8x128xf32>, vector<128x128xf32>, vector<8x128xf32> -> vector<8x128xf32>
    %133 = arith.addf %130, %132 : vector<8x128xf32>
    %134 = math.tanh %133 : vector<8x128xf32>
    %c4_i32_99 = arith.constant 4 : i32
    %135 = arith.index_cast %c4_i32_99 : i32 to index
    %c0_100 = arith.constant 0 : index
    %c0_101 = arith.constant 0 : index
    %136 = vector.load %arg11[%135, %c0_100, %c0_101] : memref<8x8x128xf32, #tpu.memory_space<vmem>>, vector<1x8x128xf32>
    %137 = vector.shape_cast %136 : vector<1x8x128xf32> to vector<8x128xf32>
    %c0_102 = arith.constant 0 : index
    %c0_103 = arith.constant 0 : index
    %138 = vector.load %arg6[%c0_102, %c0_103] : memref<128x128xf32, #tpu.memory_space<vmem>>, vector<128x128xf32>
    %cst_104 = arith.constant dense<0.000000e+00> : vector<8x128xf32>
    %139 = tpu.matmul %134, %138, %cst_104 {dimension_numbers = #tpu.dot_dimension_numbers<[1], [0], [0], [1], [0, 0, 1, 1], [], []>} : vector<8x128xf32>, vector<128x128xf32>, vector<8x128xf32> -> vector<8x128xf32>
    %140 = arith.addf %137, %139 : vector<8x128xf32>
    %141 = math.tanh %140 : vector<8x128xf32>
    %c5_i32_105 = arith.constant 5 : i32
    %142 = arith.index_cast %c5_i32_105 : i32 to index
    %c0_106 = arith.constant 0 : index
    %c0_107 = arith.constant 0 : index
    %143 = vector.load %arg11[%142, %c0_106, %c0_107] : memref<8x8x128xf32, #tpu.memory_space<vmem>>, vector<1x8x128xf32>
    %144 = vector.shape_cast %143 : vector<1x8x128xf32> to vector<8x128xf32>
    %c0_108 = arith.constant 0 : index
    %c0_109 = arith.constant 0 : index
    %145 = vector.load %arg6[%c0_108, %c0_109] : memref<128x128xf32, #tpu.memory_space<vmem>>, vector<128x128xf32>
    %cst_110 = arith.constant dense<0.000000e+00> : vector<8x128xf32>
    %146 = tpu.matmul %141, %145, %cst_110 {dimension_numbers = #tpu.dot_dimension_numbers<[1], [0], [0], [1], [0, 0, 1, 1], [], []>} : vector<8x128xf32>, vector<128x128xf32>, vector<8x128xf32> -> vector<8x128xf32>
    %147 = arith.addf %144, %146 : vector<8x128xf32>
    %148 = math.tanh %147 : vector<8x128xf32>
    %c6_i32_111 = arith.constant 6 : i32
    %149 = arith.index_cast %c6_i32_111 : i32 to index
    %c0_112 = arith.constant 0 : index
    %c0_113 = arith.constant 0 : index
    %150 = vector.load %arg11[%149, %c0_112, %c0_113] : memref<8x8x128xf32, #tpu.memory_space<vmem>>, vector<1x8x128xf32>
    %151 = vector.shape_cast %150 : vector<1x8x128xf32> to vector<8x128xf32>
    %c0_114 = arith.constant 0 : index
    %c0_115 = arith.constant 0 : index
    %152 = vector.load %arg6[%c0_114, %c0_115] : memref<128x128xf32, #tpu.memory_space<vmem>>, vector<128x128xf32>
    %cst_116 = arith.constant dense<0.000000e+00> : vector<8x128xf32>
    %153 = tpu.matmul %148, %152, %cst_116 {dimension_numbers = #tpu.dot_dimension_numbers<[1], [0], [0], [1], [0, 0, 1, 1], [], []>} : vector<8x128xf32>, vector<128x128xf32>, vector<8x128xf32> -> vector<8x128xf32>
    %154 = arith.addf %151, %153 : vector<8x128xf32>
    %155 = math.tanh %154 : vector<8x128xf32>
    %c7_i32_117 = arith.constant 7 : i32
    %156 = arith.index_cast %c7_i32_117 : i32 to index
    %c0_118 = arith.constant 0 : index
    %c0_119 = arith.constant 0 : index
    %157 = vector.load %arg11[%156, %c0_118, %c0_119] : memref<8x8x128xf32, #tpu.memory_space<vmem>>, vector<1x8x128xf32>
    %158 = vector.shape_cast %157 : vector<1x8x128xf32> to vector<8x128xf32>
    %c0_120 = arith.constant 0 : index
    %c0_121 = arith.constant 0 : index
    %159 = vector.load %arg6[%c0_120, %c0_121] : memref<128x128xf32, #tpu.memory_space<vmem>>, vector<128x128xf32>
    %cst_122 = arith.constant dense<0.000000e+00> : vector<8x128xf32>
    %160 = tpu.matmul %155, %159, %cst_122 {dimension_numbers = #tpu.dot_dimension_numbers<[1], [0], [0], [1], [0, 0, 1, 1], [], []>} : vector<8x128xf32>, vector<128x128xf32>, vector<8x128xf32> -> vector<8x128xf32>
    %161 = arith.addf %158, %160 : vector<8x128xf32>
    %162 = math.tanh %161 : vector<8x128xf32>
    %c8_i32_123 = arith.constant 8 : i32
    %c1_124 = arith.constant 1 : index
    %c0_125 = arith.constant 0 : index
    %c0_126 = arith.constant 0 : index
    %163 = vector.load %arg10[%c1_124, %c0_125, %c0_126] : memref<2x8x128xf32, #tpu.memory_space<vmem>>, vector<1x8x128xf32>
    %164 = vector.shape_cast %163 : vector<1x8x128xf32> to vector<8x128xf32>
    %165 = vector.shape_cast %162 : vector<8x128xf32> to vector<1x8x128xf32>
    tpu.vector_store %arg10[%c1_124, %c0_125, %c0_126], %165 {strides = array<i32>} : memref<2x8x128xf32, #tpu.memory_space<vmem>>, vector<1x8x128xf32>,
    %c0_i32_127 = arith.constant 0 : i32
    %166 = arith.cmpi eq, %arg1, %c0_i32_127 : i32
    %167 = arith.extui %166 : i1 to i32
    %c0_i32_128 = arith.constant 0 : i32
    %168 = arith.cmpi ne, %167, %c0_i32_128 : i32
    scf.if %168 {
      %c0_129 = arith.constant 0 : index
      %c0_130 = arith.constant 0 : index
      %169 = vector.load %arg7[%c0_129, %c0_130] : memref<128x128xf32, #tpu.memory_space<vmem>>, vector<128x128xf32>
      %cst_131 = arith.constant dense<0.000000e+00> : vector<8x128xf32>
      %170 = tpu.matmul %162, %169, %cst_131 {dimension_numbers = #tpu.dot_dimension_numbers<[1], [0], [0], [1], [0, 0, 1, 1], [], []>} : vector<8x128xf32>, vector<128x128xf32>, vector<8x128xf32> -> vector<8x128xf32>
      %c0_132 = arith.constant 0 : index
      %c0_133 = arith.constant 0 : index
      %171 = vector.load %arg8[%c0_132, %c0_133] : memref<1x128xf32, #tpu.memory_space<vmem>>, vector<1x128xf32>
      %172 = vector.broadcast %171 : vector<1x128xf32> to vector<8x128xf32>
      %173 = arith.addf %170, %172 : vector<8x128xf32>
      %c0_134 = arith.constant 0 : index
      %c0_135 = arith.constant 0 : index
      %174 = vector.load %arg9[%c0_134, %c0_135] : memref<8x128xf32, #tpu.memory_space<vmem>>, vector<8x128xf32>
      tpu.vector_store %arg9[%c0_134, %c0_135], %173 {strides = array<i32>} : memref<8x128xf32, #tpu.memory_space<vmem>>, vector<8x128xf32>,
    } else {
    }
    return
  }
  func.func @transform_0(%arg0: i32, %arg1: i32) -> (i32, i32, i32) {
    %c0_i32 = arith.constant 0 : i32
    %c0_i32_0 = arith.constant 0 : i32
    return %arg1, %arg0, %c0_i32 : i32, i32, i32
  }
  func.func @transform_1(%arg0: i32, %arg1: i32) -> (i32, i32) {
    %c0_i32 = arith.constant 0 : i32
    %c0_i32_0 = arith.constant 0 : i32
    %c0_i32_1 = arith.constant 0 : i32
    return %c0_i32, %c0_i32_0 : i32, i32
  }
  func.func @transform_2(%arg0: i32, %arg1: i32) -> (i32, i32) {
    %c0_i32 = arith.constant 0 : i32
    %c0_i32_0 = arith.constant 0 : i32
    %c0_i32_1 = arith.constant 0 : i32
    return %c0_i32, %c0_i32_0 : i32, i32
  }
  func.func @transform_3(%arg0: i32, %arg1: i32) -> (i32, i32) {
    %c0_i32 = arith.constant 0 : i32
    %c0_i32_0 = arith.constant 0 : i32
    %c0_i32_1 = arith.constant 0 : i32
    return %c0_i32, %c0_i32_0 : i32, i32
  }
  func.func @transform_4(%arg0: i32, %arg1: i32) -> (i32, i32) {
    %c0_i32 = arith.constant 0 : i32
    %c0_i32_0 = arith.constant 0 : i32
    %c0_i32_1 = arith.constant 0 : i32
    return %c0_i32, %c0_i32_0 : i32, i32
  }
  func.func @transform_5(%arg0: i32, %arg1: i32) -> (i32, i32) {
    %c0_i32 = arith.constant 0 : i32
    %c0_i32_0 = arith.constant 0 : i32
    %c0_i32_1 = arith.constant 0 : i32
    return %c0_i32, %c0_i32_0 : i32, i32
  }
  func.func @transform_6(%arg0: i32, %arg1: i32) -> (i32, i32) {
    %c0_i32 = arith.constant 0 : i32
    %c0_i32_0 = arith.constant 0 : i32
    %c0_i32_1 = arith.constant 0 : i32
    return %c0_i32, %c0_i32_0 : i32, i32
  }
  func.func @transform_7(%arg0: i32, %arg1: i32) -> (i32, i32) {
    %c0_i32 = arith.constant 0 : i32
    %c0_i32_0 = arith.constant 0 : i32
    return %arg0, %c0_i32 : i32, i32
  }
}

</mosaic_0001>

<llo_original>
// kernel: tpu_custom_call.1
$region0: #{tpu_custom_call.1}
  #allocation0 [shape = 'u32[]', space=smem, size = 0x4, offset = 0x4, fixed_abs, tag = 'smem constant byte address 0x4 - core index']
  #allocation1 [shape = 'u32[144,128]{1,0:T(1,128)}', space=vmem, size = 0x12000, scoped, tag = 'internal scratch']
  #allocation2 [shape = 'f32[2,8,128]{2,1,0:T(8,128)}', space=vmem, size = 0x2000, scoped, tag = 'scratch operand']
  #allocation3 [shape = 'f32[8,8,128]{2,1,0:T(8,128)}', space=vmem, size = 0x8000, scoped, tag = 'scratch operand']
  %s0 = inlined_call_operand.hbm [shape: f32[8,8,128], index: 0, kind: input, shape index: {}]
  %s1 = inlined_call_operand.hbm [shape: f32[128,128], index: 1, kind: input, shape index: {}]
  %s2 = inlined_call_operand.vmem [shape: f32[1,128], index: 2, kind: input, shape index: {}]
  %s3 = inlined_call_operand.hbm [shape: f32[128,128], index: 3, kind: input, shape index: {}]
  %s4 = inlined_call_operand.hbm [shape: f32[128,128], index: 4, kind: input, shape index: {}]
  %s5 = inlined_call_operand.hbm [shape: f32[128,128], index: 5, kind: input, shape index: {}]
  %s6 = inlined_call_operand.vmem [shape: f32[1,128], index: 6, kind: input, shape index: {}]
  %s7 = inlined_call_operand.hbm [shape: f32[8,128], index: 7, kind: output, shape index: {}]
  %s8 = sld [smem:[#allocation0]]
  $region66: #{tpu_custom_call.1} parent=0
    _
  %s10 = ssub.s32 1, %s8
  %s11 = scalar_select 0, %s10, %s8
  $region1: #{tpu_custom_call.1} parent=0
    #allocation4 [shape = 'u8[32768]{0}', space=vmem, size = 0x8000, scoped, tag = 'input window, operand 0, single buffered']
    #allocation5 [shape = 's32[1]{0}', space=sflag, size = 0x4, scoped, tag = 'scoped memory for tpu_custom_call.1']
    #allocation6 [shape = 's32[1]{0}', space=sflag, size = 0x4, scoped, tag = 'scoped memory for tpu_custom_call.1']
    #allocation7 [shape = 'u8[65536]{0}', space=vmem, size = 0x10000, scoped, tag = 'input window, operand 1, single buffered']
    #allocation8 [shape = 's32[1]{0}', space=sflag, size = 0x4, scoped, tag = 'scoped memory for tpu_custom_call.1']
    #allocation9 [shape = 'u8[65536]{0}', space=vmem, size = 0x10000, scoped, tag = 'input window, operand 3, single buffered']
    #allocation10 [shape = 'u8[65536]{0}', space=vmem, size = 0x10000, scoped, tag = 'input window, operand 4, single buffered']
    #allocation11 [shape = 's32[1]{0}', space=sflag, size = 0x4, scoped, tag = 'scoped memory for tpu_custom_call.1']
    #allocation12 [shape = 'u8[65536]{0}', space=vmem, size = 0x10000, scoped, tag = 'input window, operand 5, single buffered']
    #allocation13 [shape = 'u8[4096]{0}', space=vmem, size = 0x1000, scoped, tag = 'output window, operand 0, single buffered']
    %12 = vsyncpa [#allocation5], 0
    %13 = vsyncpa [#allocation8], 0
    %14 = vsyncpa [#allocation11], 0
    %15 = vsyncpa [#allocation6], 0
    // Predicated region
    $region2: #{tpu_custom_call.1} parent=1 // pred_check
      _
    $region3: #{tpu_custom_call.1} parent=1 // pred_check_branch
      %17 = sbr.rel (0) target = $region5
    $region4: #{tpu_custom_call.1} parent=1 // pred_region
      %s19 = ssub.s32 1024, 1024
      %20 = vsyncadd [#allocation5], %s19
      %s21 = sshll.u32 [#allocation4], 4
      %s22 = int_to_ptr.vmem [resolvable:$true] %s21
      %27 = dma.hbm_to_vmem [thread:$0]  %s0, 1024, %s22, [#allocation5], 128, 128, 8
    $region5: #{tpu_custom_call.1} parent=1 // pred_fallthru
      _
    // Predicated region
    $region6: #{tpu_custom_call.1} parent=1 // pred_check
      _
    $region7: #{tpu_custom_call.1} parent=1 // pred_check_branch
      %29 = sbr.rel (0) target = $region9
    $region8: #{tpu_custom_call.1} parent=1 // pred_region
      %s31 = ssub.s32 2048, 2048
      %32 = vsyncadd [#allocation8], %s31
      %s33 = sshll.u32 [#allocation7], 4
      %s34 = int_to_ptr.vmem [resolvable:$true] %s33
      %39 = dma.hbm_to_vmem [thread:$0]  %s1, 2048, %s34, [#allocation8], 128, 128, 8
    $region9: #{tpu_custom_call.1} parent=1 // pred_fallthru
      _
    // Predicated region
    $region10: #{tpu_custom_call.1} parent=1 // pred_check
      _
    $region11: #{tpu_custom_call.1} parent=1 // pred_check_branch
      %41 = sbr.rel (0) target = $region13
    $region12: #{tpu_custom_call.1} parent=1 // pred_region
      _
    $region13: #{tpu_custom_call.1} parent=1 // pred_fallthru
      _
    // Predicated region
    $region14: #{tpu_custom_call.1} parent=1 // pred_check
      _
    $region15: #{tpu_custom_call.1} parent=1 // pred_check_branch
      %43 = sbr.rel (0) target = $region17
    $region16: #{tpu_custom_call.1} parent=1 // pred_region
      %s45 = ssub.s32 2048, 2048
      %46 = vsyncadd [#allocation8], %s45
      %s47 = sshll.u32 [#allocation9], 4
      %s48 = int_to_ptr.vmem [resolvable:$true] %s47
      %53 = dma.hbm_to_vmem [thread:$0]  %s3, 2048, %s48, [#allocation8], 128, 128, 8
    $region17: #{tpu_custom_call.1} parent=1 // pred_fallthru
      _
    // Predicated region
    $region18: #{tpu_custom_call.1} parent=1 // pred_check
      _
    $region19: #{tpu_custom_call.1} parent=1 // pred_check_branch
      %55 = sbr.rel (0) target = $region21
    $region20: #{tpu_custom_call.1} parent=1 // pred_region
      %s57 = ssub.s32 2048, 2048
      %58 = vsyncadd [#allocation11], %s57
      %s59 = sshll.u32 [#allocation10], 4
      %s60 = int_to_ptr.vmem [resolvable:$true] %s59
      %65 = dma.hbm_to_vmem [thread:$0]  %s4, 2048, %s60, [#allocation11], 128, 128, 8
    $region21: #{tpu_custom_call.1} parent=1 // pred_fallthru
      _
    // Predicated region
    $region22: #{tpu_custom_call.1} parent=1 // pred_check
      _
    $region23: #{tpu_custom_call.1} parent=1 // pred_check_branch
      %67 = sbr.rel (0) target = $region25
    $region24: #{tpu_custom_call.1} parent=1 // pred_region
      %s69 = ssub.s32 2048, 2048
      %70 = vsyncadd [#allocation11], %s69
      %s71 = sshll.u32 [#allocation12], 4
      %s72 = int_to_ptr.vmem [resolvable:$true] %s71
      %77 = dma.hbm_to_vmem [thread:$0]  %s5, 2048, %s72, [#allocation11], 128, 128, 8
    $region25: #{tpu_custom_call.1} parent=1 // pred_fallthru
      _
    // Predicated region
    $region26: #{tpu_custom_call.1} parent=1 // pred_check
      _
    $region27: #{tpu_custom_call.1} parent=1 // pred_check_branch
      %79 = sbr.rel (0) target = $region29
    $region28: #{tpu_custom_call.1} parent=1 // pred_region
      _
    $region29: #{tpu_custom_call.1} parent=1 // pred_fallthru
      _
    // Predicated region
    $region30: #{tpu_custom_call.1} parent=1 // pred_check
      _
    $region31: #{tpu_custom_call.1} parent=1 // pred_check_branch
      %81 = sbr.rel (0) target = $region33
    $region32: #{tpu_custom_call.1} parent=1 // pred_region
      %82 = dma.done [#allocation5], 1024
    $region33: #{tpu_custom_call.1} parent=1 // pred_fallthru
      _
    // Predicated region
    $region34: #{tpu_custom_call.1} parent=1 // pred_check
      _
    $region35: #{tpu_custom_call.1} parent=1 // pred_check_branch
      %84 = sbr.rel (0) target = $region37
    $region36: #{tpu_custom_call.1} parent=1 // pred_region
      %85 = dma.done [#allocation8], 2048
    $region37: #{tpu_custom_call.1} parent=1 // pred_fallthru
      _
    // Predicated region
    $region38: #{tpu_custom_call.1} parent=1 // pred_check
      _
    $region39: #{tpu_custom_call.1} parent=1 // pred_check_branch
      %87 = sbr.rel (0) target = $region41
    $region40: #{tpu_custom_call.1} parent=1 // pred_region
      %88 = dma.done [#allocation8], 2048
    $region41: #{tpu_custom_call.1} parent=1 // pred_fallthru
      _
    // Predicated region
    $region42: #{tpu_custom_call.1} parent=1 // pred_check
      _
    $region43: #{tpu_custom_call.1} parent=1 // pred_check_branch
      %90 = sbr.rel (0) target = $region45
    $region44: #{tpu_custom_call.1} parent=1 // pred_region
      %91 = dma.done [#allocation11], 2048
    $region45: #{tpu_custom_call.1} parent=1 // pred_fallthru
      _
    // Predicated region
    $region46: #{tpu_custom_call.1} parent=1 // pred_check
      _
    $region47: #{tpu_custom_call.1} parent=1 // pred_check_branch
      %93 = sbr.rel (0) target = $region49
    $region48: #{tpu_custom_call.1} parent=1 // pred_region
      %94 = dma.done [#allocation11], 2048
    $region49: #{tpu_custom_call.1} parent=1 // pred_fallthru
      _
    %p95 = scmp.eq.s32.totalorder 0, 0
    // Predicated region
    $region50: #{tpu_custom_call.1} parent=1 // pred_check
      %p96 = pneg %p95
    $region51: #{tpu_custom_call.1} parent=1 // pred_check_branch
      %98 = sbr.rel (%p96) target = $region53
    $region52: #{tpu_custom_call.1} parent=1 // pred_region
      %99 = vst [vmem:[#allocation2] sm:$0xff] 0.0
      %100 = vst [vmem:[#allocation2 + $0x8] sm:$0xff] 0.0
    $region53: #{tpu_custom_call.1} parent=1 // pred_fallthru
      _
    %v101 = vld [vmem:[#allocation2] sm:$0xff]
    %v102 = vld [vmem:[#allocation4] sm:$0xff]
    %v103 = vld [vmem:[#allocation9] sm:$0xff]
    %v104 = vld [vmem:[#allocation9 + $0x8] sm:$0xff]
    %v105 = vld [vmem:[#allocation9 + $0x10] sm:$0xff]
    %v106 = vld [vmem:[#allocation9 + $0x18] sm:$0xff]
    %v107 = vld [vmem:[#allocation9 + $0x20] sm:$0xff]
    %v108 = vld [vmem:[#allocation9 + $0x28] sm:$0xff]
    %v109 = vld [vmem:[#allocation9 + $0x30] sm:$0xff]
    %v110 = vld [vmem:[#allocation9 + $0x38] sm:$0xff]
    %v111 = vld [vmem:[#allocation9 + $0x40] sm:$0xff]
    %v112 = vld [vmem:[#allocation9 + $0x48] sm:$0xff]
    %v113 = vld [vmem:[#allocation9 + $0x50] sm:$0xff]
    %v114 = vld [vmem:[#allocation9 + $0x58] sm:$0xff]
    %v115 = vld [vmem:[#allocation9 + $0x60] sm:$0xff]
    %v116 = vld [vmem:[#allocation9 + $0x68] sm:$0xff]
    %v117 = vld [vmem:[#allocation9 + $0x70] sm:$0xff]
    %v118 = vld [vmem:[#allocation9 + $0x78] sm:$0xff]
    %119 = vmatprep.subr.mxu0 0.0
    %120 = vmatpush1.msra.mxu0 %v103
    %121 = vmatprep.subr.mxu0 0.0
    %122 = vmatpush1.msra.mxu0 %v104
    %123 = vmatprep.subr.mxu0 0.0
    %124 = vmatpush1.msra.mxu0 %v105
    %125 = vmatprep.subr.mxu0 0.0
    %126 = vmatpush1.msra.mxu0 %v106
    %127 = vmatprep.subr.mxu0 0.0
    %128 = vmatpush1.msra.mxu0 %v107
    %129 = vmatprep.subr.mxu0 0.0
    %130 = vmatpush1.msra.mxu0 %v108
    %131 = vmatprep.subr.mxu0 0.0
    %132 = vmatpush1.msra.mxu0 %v109
    %133 = vmatprep.subr.mxu0 0.0
    %134 = vmatpush1.msra.mxu0 %v110
    %135 = vmatprep.subr.mxu0 0.0
    %136 = vmatpush1.msra.mxu0 %v111
    %137 = vmatprep.subr.mxu0 0.0
    %138 = vmatpush1.msra.mxu0 %v112
    %139 = vmatprep.subr.mxu0 0.0
    %140 = vmatpush1.msra.mxu0 %v113
    %141 = vmatprep.subr.mxu0 0.0
    %142 = vmatpush1.msra.mxu0 %v114
    %143 = vmatprep.subr.mxu0 0.0
    %144 = vmatpush1.msra.mxu0 %v115
    %145 = vmatprep.subr.mxu0 0.0
    %146 = vmatpush1.msra.mxu0 %v116
    %147 = vmatprep.subr.mxu0 0.0
    %148 = vmatpush1.msra.mxu0 %v117
    %149 = vmatprep.subr.mxu0 0.0
    %150 = vmatpush1.msra.mxu0 %v118
    %151 = vmatprep.subr.mxu0 0.0
    %152 = vmatpush1.msra.mxu0 0.0
    %153 = vmatprep.subr.mxu0 0.0
    %154 = vmatpush1.msra.mxu0 0.0
    %155 = vmatprep.subr.mxu0 0.0
    %156 = vmatpush1.msra.mxu0 0.0
    %157 = vmatprep.subr.mxu0 0.0
    %158 = vmatpush1.msra.mxu0 0.0
    %159 = vmatprep.subr.mxu0 0.0
    %160 = vmatpush1.msra.mxu0 0.0
    %161 = vmatprep.subr.mxu0 0.0
    %162 = vmatpush1.msra.mxu0 0.0
    %163 = vmatprep.subr.mxu0 0.0
    %164 = vmatpush1.msra.mxu0 0.0
    %165 = vmatprep.subr.mxu0 0.0
    %166 = vmatpush1.msra.mxu0 0.0
    %167 = vmatprep.subr.mxu0 0.0
    %168 = vmatpush1.msra.mxu0 0.0
    %169 = vmatprep.subr.mxu0 0.0
    %170 = vmatpush1.msra.mxu0 0.0
    %171 = vmatprep.subr.mxu0 0.0
    %172 = vmatpush1.msra.mxu0 0.0
    %173 = vmatprep.subr.mxu0 0.0
    %174 = vmatpush1.msra.mxu0 0.0
    %175 = vmatprep.subr.mxu0 0.0
    %176 = vmatpush1.msra.mxu0 0.0
    %177 = vmatprep.subr.mxu0 0.0
    %178 = vmatpush1.msra.mxu0 0.0
    %179 = vmatprep.subr.mxu0 0.0
    %180 = vmatpush1.msra.mxu0 0.0
    %181 = vmatprep.subr.mxu0 0.0
    %182 = vmatpush1.msra.mxu0 0.0
    %183 = vmatprep.mubr.f32.mxu0 0.0
    %184 = vmatmul.mubr.f32.gmra.mrb[0].mxu0 %v101
    %v185 = vpop.f32.mrb[0].mxu0
    %v186 = vadd.f32 0.0, %v185
    %v187 = vpop.f32.mrb[0].mxu0
    %188 = vdwg.mxu0
    %v189 = vadd.f32 %v102, %v186
    %v190 = vtanh.pop %v189
    %191 = vst [vmem:[#allocation3] sm:$0xff] %v190
    %s192 = scalar_lea.vmem [#allocation4], 8
    %v193 = vld [vmem:[%s192] sm:$0xff]
    %v194 = vld [vmem:[#allocation9] sm:$0xff]
    %v195 = vld [vmem:[#allocation9 + $0x8] sm:$0xff]
    %v196 = vld [vmem:[#allocation9 + $0x10] sm:$0xff]
    %v197 = vld [vmem:[#allocation9 + $0x18] sm:$0xff]
    %v198 = vld [vmem:[#allocation9 + $0x20] sm:$0xff]
    %v199 = vld [vmem:[#allocation9 + $0x28] sm:$0xff]
    %v200 = vld [vmem:[#allocation9 + $0x30] sm:$0xff]
    %v201 = vld [vmem:[#allocation9 + $0x38] sm:$0xff]
    %v202 = vld [vmem:[#allocation9 + $0x40] sm:$0xff]
    %v203 = vld [vmem:[#allocation9 + $0x48] sm:$0xff]
    %v204 = vld [vmem:[#allocation9 + $0x50] sm:$0xff]
    %v205 = vld [vmem:[#allocation9 + $0x58] sm:$0xff]
    %v206 = vld [vmem:[#allocation9 + $0x60] sm:$0xff]
    %v207 = vld [vmem:[#allocation9 + $0x68] sm:$0xff]
    %v208 = vld [vmem:[#allocation9 + $0x70] sm:$0xff]
    %v209 = vld [vmem:[#allocation9 + $0x78] sm:$0xff]
    %210 = vmatprep.subr.mxu0 0.0
    %211 = vmatpush1.msra.mxu0 %v194
    %212 = vmatprep.subr.mxu0 0.0
    %213 = vmatpush1.msra.mxu0 %v195
    %214 = vmatprep.subr.mxu0 0.0
    %215 = vmatpush1.msra.mxu0 %v196
    %216 = vmatprep.subr.mxu0 0.0
    %217 = vmatpush1.msra.mxu0 %v197
    %218 = vmatprep.subr.mxu0 0.0
    %219 = vmatpush1.msra.mxu0 %v198
    %220 = vmatprep.subr.mxu0 0.0
    %221 = vmatpush1.msra.mxu0 %v199
    %222 = vmatprep.subr.mxu0 0.0
    %223 = vmatpush1.msra.mxu0 %v200
    %224 = vmatprep.subr.mxu0 0.0
    %225 = vmatpush1.msra.mxu0 %v201
    %226 = vmatprep.subr.mxu0 0.0
    %227 = vmatpush1.msra.mxu0 %v202
    %228 = vmatprep.subr.mxu0 0.0
    %229 = vmatpush1.msra.mxu0 %v203
    %230 = vmatprep.subr.mxu0 0.0
    %231 = vmatpush1.msra.mxu0 %v204
    %232 = vmatprep.subr.mxu0 0.0
    %233 = vmatpush1.msra.mxu0 %v205
    %234 = vmatprep.subr.mxu0 0.0
    %235 = vmatpush1.msra.mxu0 %v206
    %236 = vmatprep.subr.mxu0 0.0
    %237 = vmatpush1.msra.mxu0 %v207
    %238 = vmatprep.subr.mxu0 0.0
    %239 = vmatpush1.msra.mxu0 %v208
    %240 = vmatprep.subr.mxu0 0.0
    %241 = vmatpush1.msra.mxu0 %v209
    %242 = vmatprep.subr.mxu0 0.0
    %243 = vmatpush1.msra.mxu0 0.0
    %244 = vmatprep.subr.mxu0 0.0
    %245 = vmatpush1.msra.mxu0 0.0
    %246 = vmatprep.subr.mxu0 0.0
    %247 = vmatpush1.msra.mxu0 0.0
    %248 = vmatprep.subr.mxu0 0.0
    %249 = vmatpush1.msra.mxu0 0.0
    %250 = vmatprep.subr.mxu0 0.0
    %251 = vmatpush1.msra.mxu0 0.0
    %252 = vmatprep.subr.mxu0 0.0
    %253 = vmatpush1.msra.mxu0 0.0
    %254 = vmatprep.subr.mxu0 0.0
    %255 = vmatpush1.msra.mxu0 0.0
    %256 = vmatprep.subr.mxu0 0.0
    %257 = vmatpush1.msra.mxu0 0.0
    %258 = vmatprep.subr.mxu0 0.0
    %259 = vmatpush1.msra.mxu0 0.0
    %260 = vmatprep.subr.mxu0 0.0
    %261 = vmatpush1.msra.mxu0 0.0
    %262 = vmatprep.subr.mxu0 0.0
    %263 = vmatpush1.msra.mxu0 0.0
    %264 = vmatprep.subr.mxu0 0.0
    %265 = vmatpush1.msra.mxu0 0.0
    %266 = vmatprep.subr.mxu0 0.0
    %267 = vmatpush1.msra.mxu0 0.0
    %268 = vmatprep.subr.mxu0 0.0
    %269 = vmatpush1.msra.mxu0 0.0
    %270 = vmatprep.subr.mxu0 0.0
    %271 = vmatpush1.msra.mxu0 0.0
    %272 = vmatprep.subr.mxu0 0.0
    %273 = vmatpush1.msra.mxu0 0.0
    %274 = vmatprep.mubr.f32.mxu0 0.0
    %275 = vmatmul.mubr.f32.gmra.mrb[0].mxu0 %v190
    %v276 = vpop.f32.mrb[0].mxu0
    %v277 = vadd.f32 0.0, %v276
    %v278 = vpop.f32.mrb[0].mxu0
    %279 = vdwg.mxu0
    %v280 = vadd.f32 %v193, %v277
    %v281 = vtanh.pop %v280
    %s282 = scalar_lea.vmem [#allocation3], 8
    %283 = vst [vmem:[%s282] sm:$0xff] %v281
    %s284 = scalar_lea.vmem [#allocation4], 16
    %v285 = vld [vmem:[%s284] sm:$0xff]
    %v286 = vld [vmem:[#allocation9] sm:$0xff]
    %v287 = vld [vmem:[#allocation9 + $0x8] sm:$0xff]
    %v288 = vld [vmem:[#allocation9 + $0x10] sm:$0xff]
    %v289 = vld [vmem:[#allocation9 + $0x18] sm:$0xff]
    %v290 = vld [vmem:[#allocation9 + $0x20] sm:$0xff]
    %v291 = vld [vmem:[#allocation9 + $0x28] sm:$0xff]
    %v292 = vld [vmem:[#allocation9 + $0x30] sm:$0xff]
    %v293 = vld [vmem:[#allocation9 + $0x38] sm:$0xff]
    %v294 = vld [vmem:[#allocation9 + $0x40] sm:$0xff]
    %v295 = vld [vmem:[#allocation9 + $0x48] sm:$0xff]
    %v296 = vld [vmem:[#allocation9 + $0x50] sm:$0xff]
    %v297 = vld [vmem:[#allocation9 + $0x58] sm:$0xff]
    %v298 = vld [vmem:[#allocation9 + $0x60] sm:$0xff]
    %v299 = vld [vmem:[#allocation9 + $0x68] sm:$0xff]
    %v300 = vld [vmem:[#allocation9 + $0x70] sm:$0xff]
    %v301 = vld [vmem:[#allocation9 + $0x78] sm:$0xff]
    %302 = vmatprep.subr.mxu0 0.0
    %303 = vmatpush1.msra.mxu0 %v286
    %304 = vmatprep.subr.mxu0 0.0
    %305 = vmatpush1.msra.mxu0 %v287
    %306 = vmatprep.subr.mxu0 0.0
    %307 = vmatpush1.msra.mxu0 %v288
    %308 = vmatprep.subr.mxu0 0.0
    %309 = vmatpush1.msra.mxu0 %v289
    %310 = vmatprep.subr.mxu0 0.0
    %311 = vmatpush1.msra.mxu0 %v290
    %312 = vmatprep.subr.mxu0 0.0
    %313 = vmatpush1.msra.mxu0 %v291
    %314 = vmatprep.subr.mxu0 0.0
    %315 = vmatpush1.msra.mxu0 %v292
    %316 = vmatprep.subr.mxu0 0.0
    %317 = vmatpush1.msra.mxu0 %v293
    %318 = vmatprep.subr.mxu0 0.0
    %319 = vmatpush1.msra.mxu0 %v294
    %320 = vmatprep.subr.mxu0 0.0
    %321 = vmatpush1.msra.mxu0 %v295
    %322 = vmatprep.subr.mxu0 0.0
    %323 = vmatpush1.msra.mxu0 %v296
    %324 = vmatprep.subr.mxu0 0.0
    %325 = vmatpush1.msra.mxu0 %v297
    %326 = vmatprep.subr.mxu0 0.0
    %327 = vmatpush1.msra.mxu0 %v298
    %328 = vmatprep.subr.mxu0 0.0
    %329 = vmatpush1.msra.mxu0 %v299
    %330 = vmatprep.subr.mxu0 0.0
    %331 = vmatpush1.msra.mxu0 %v300
    %332 = vmatprep.subr.mxu0 0.0
    %333 = vmatpush1.msra.mxu0 %v301
    %334 = vmatprep.subr.mxu0 0.0
    %335 = vmatpush1.msra.mxu0 0.0
    %336 = vmatprep.subr.mxu0 0.0
    %337 = vmatpush1.msra.mxu0 0.0
    %338 = vmatprep.subr.mxu0 0.0
    %339 = vmatpush1.msra.mxu0 0.0
    %340 = vmatprep.subr.mxu0 0.0
    %341 = vmatpush1.msra.mxu0 0.0
    %342 = vmatprep.subr.mxu0 0.0
    %343 = vmatpush1.msra.mxu0 0.0
    %344 = vmatprep.subr.mxu0 0.0
    %345 = vmatpush1.msra.mxu0 0.0
    %346 = vmatprep.subr.mxu0 0.0
    %347 = vmatpush1.msra.mxu0 0.0
    %348 = vmatprep.subr.mxu0 0.0
    %349 = vmatpush1.msra.mxu0 0.0
    %350 = vmatprep.subr.mxu0 0.0
    %351 = vmatpush1.msra.mxu0 0.0
    %352 = vmatprep.subr.mxu0 0.0
    %353 = vmatpush1.msra.mxu0 0.0
    %354 = vmatprep.subr.mxu0 0.0
    %355 = vmatpush1.msra.mxu0 0.0
    %356 = vmatprep.subr.mxu0 0.0
    %357 = vmatpush1.msra.mxu0 0.0
    %358 = vmatprep.subr.mxu0 0.0
    %359 = vmatpush1.msra.mxu0 0.0
    %360 = vmatprep.subr.mxu0 0.0
    %361 = vmatpush1.msra.mxu0 0.0
    %362 = vmatprep.subr.mxu0 0.0
    %363 = vmatpush1.msra.mxu0 0.0
    %364 = vmatprep.subr.mxu0 0.0
    %365 = vmatpush1.msra.mxu0 0.0
    %366 = vmatprep.mubr.f32.mxu0 0.0
    %367 = vmatmul.mubr.f32.gmra.mrb[0].mxu0 %v281
    %v368 = vpop.f32.mrb[0].mxu0
    %v369 = vadd.f32 0.0, %v368
    %v370 = vpop.f32.mrb[0].mxu0
    %371 = vdwg.mxu0
    %v372 = vadd.f32 %v285, %v369
    %v373 = vtanh.pop %v372
    %s374 = scalar_lea.vmem [#allocation3], 16
    %375 = vst [vmem:[%s374] sm:$0xff] %v373
    %s376 = scalar_lea.vmem [#allocation4], 24
    %v377 = vld [vmem:[%s376] sm:$0xff]
    %v378 = vld [vmem:[#allocation9] sm:$0xff]
    %v379 = vld [vmem:[#allocation9 + $0x8] sm:$0xff]
    %v380 = vld [vmem:[#allocation9 + $0x10] sm:$0xff]
    %v381 = vld [vmem:[#allocation9 + $0x18] sm:$0xff]
    %v382 = vld [vmem:[#allocation9 + $0x20] sm:$0xff]
    %v383 = vld [vmem:[#allocation9 + $0x28] sm:$0xff]
    %v384 = vld [vmem:[#allocation9 + $0x30] sm:$0xff]
    %v385 = vld [vmem:[#allocation9 + $0x38] sm:$0xff]
    %v386 = vld [vmem:[#allocation9 + $0x40] sm:$0xff]
    %v387 = vld [vmem:[#allocation9 + $0x48] sm:$0xff]
    %v388 = vld [vmem:[#allocation9 + $0x50] sm:$0xff]
    %v389 = vld [vmem:[#allocation9 + $0x58] sm:$0xff]
    %v390 = vld [vmem:[#allocation9 + $0x60] sm:$0xff]
    %v391 = vld [vmem:[#allocation9 + $0x68] sm:$0xff]
    %v392 = vld [vmem:[#allocation9 + $0x70] sm:$0xff]
    %v393 = vld [vmem:[#allocation9 + $0x78] sm:$0xff]
    %394 = vmatprep.subr.mxu0 0.0
    %395 = vmatpush1.msra.mxu0 %v378
    %396 = vmatprep.subr.mxu0 0.0
    %397 = vmatpush1.msra.mxu0 %v379
    %398 = vmatprep.subr.mxu0 0.0
    %399 = vmatpush1.msra.mxu0 %v380
    %400 = vmatprep.subr.mxu0 0.0
    %401 = vmatpush1.msra.mxu0 %v381
    %402 = vmatprep.subr.mxu0 0.0
    %403 = vmatpush1.msra.mxu0 %v382
    %404 = vmatprep.subr.mxu0 0.0
    %405 = vmatpush1.msra.mxu0 %v383
    %406 = vmatprep.subr.mxu0 0.0
    %407 = vmatpush1.msra.mxu0 %v384
    %408 = vmatprep.subr.mxu0 0.0
    %409 = vmatpush1.msra.mxu0 %v385
    %410 = vmatprep.subr.mxu0 0.0
    %411 = vmatpush1.msra.mxu0 %v386
    %412 = vmatprep.subr.mxu0 0.0
    %413 = vmatpush1.msra.mxu0 %v387
    %414 = vmatprep.subr.mxu0 0.0
    %415 = vmatpush1.msra.mxu0 %v388
    %416 = vmatprep.subr.mxu0 0.0
    %417 = vmatpush1.msra.mxu0 %v389
    %418 = vmatprep.subr.mxu0 0.0
    %419 = vmatpush1.msra.mxu0 %v390
    %420 = vmatprep.subr.mxu0 0.0
    %421 = vmatpush1.msra.mxu0 %v391
    %422 = vmatprep.subr.mxu0 0.0
    %423 = vmatpush1.msra.mxu0 %v392
    %424 = vmatprep.subr.mxu0 0.0
    %425 = vmatpush1.msra.mxu0 %v393
    %426 = vmatprep.subr.mxu0 0.0
    %427 = vmatpush1.msra.mxu0 0.0
    %428 = vmatprep.subr.mxu0 0.0
    %429 = vmatpush1.msra.mxu0 0.0
    %430 = vmatprep.subr.mxu0 0.0
    %431 = vmatpush1.msra.mxu0 0.0
    %432 = vmatprep.subr.mxu0 0.0
    %433 = vmatpush1.msra.mxu0 0.0
    %434 = vmatprep.subr.mxu0 0.0
    %435 = vmatpush1.msra.mxu0 0.0
    %436 = vmatprep.subr.mxu0 0.0
    %437 = vmatpush1.msra.mxu0 0.0
    %438 = vmatprep.subr.mxu0 0.0
    %439 = vmatpush1.msra.mxu0 0.0
    %440 = vmatprep.subr.mxu0 0.0
    %441 = vmatpush1.msra.mxu0 0.0
    %442 = vmatprep.subr.mxu0 0.0
    %443 = vmatpush1.msra.mxu0 0.0
    %444 = vmatprep.subr.mxu0 0.0
    %445 = vmatpush1.msra.mxu0 0.0
    %446 = vmatprep.subr.mxu0 0.0
    %447 = vmatpush1.msra.mxu0 0.0
    %448 = vmatprep.subr.mxu0 0.0
    %449 = vmatpush1.msra.mxu0 0.0
    %450 = vmatprep.subr.mxu0 0.0
    %451 = vmatpush1.msra.mxu0 0.0
    %452 = vmatprep.subr.mxu0 0.0
    %453 = vmatpush1.msra.mxu0 0.0
    %454 = vmatprep.subr.mxu0 0.0
    %455 = vmatpush1.msra.mxu0 0.0
    %456 = vmatprep.subr.mxu0 0.0
    %457 = vmatpush1.msra.mxu0 0.0
    %458 = vmatprep.mubr.f32.mxu0 0.0
    %459 = vmatmul.mubr.f32.gmra.mrb[0].mxu0 %v373
    %v460 = vpop.f32.mrb[0].mxu0
    %v461 = vadd.f32 0.0, %v460
    %v462 = vpop.f32.mrb[0].mxu0
    %463 = vdwg.mxu0
    %v464 = vadd.f32 %v377, %v461
    %v465 = vtanh.pop %v464
    %s466 = scalar_lea.vmem [#allocation3], 24
    %467 = vst [vmem:[%s466] sm:$0xff] %v465
    %s468 = scalar_lea.vmem [#allocation4], 32
    %v469 = vld [vmem:[%s468] sm:$0xff]
    %v470 = vld [vmem:[#allocation9] sm:$0xff]
    %v471 = vld [vmem:[#allocation9 + $0x8] sm:$0xff]
    %v472 = vld [vmem:[#allocation9 + $0x10] sm:$0xff]
    %v473 = vld [vmem:[#allocation9 + $0x18] sm:$0xff]
    %v474 = vld [vmem:[#allocation9 + $0x20] sm:$0xff]
    %v475 = vld [vmem:[#allocation9 + $0x28] sm:$0xff]
    %v476 = vld [vmem:[#allocation9 + $0x30] sm:$0xff]
    %v477 = vld [vmem:[#allocation9 + $0x38] sm:$0xff]
    %v478 = vld [vmem:[#allocation9 + $0x40] sm:$0xff]
    %v479 = vld [vmem:[#allocation9 + $0x48] sm:$0xff]
    %v480 = vld [vmem:[#allocation9 + $0x50] sm:$0xff]
    %v481 = vld [vmem:[#allocation9 + $0x58] sm:$0xff]
    %v482 = vld [vmem:[#allocation9 + $0x60] sm:$0xff]
    %v483 = vld [vmem:[#allocation9 + $0x68] sm:$0xff]
    %v484 = vld [vmem:[#allocation9 + $0x70] sm:$0xff]
    %v485 = vld [vmem:[#allocation9 + $0x78] sm:$0xff]
    %486 = vmatprep.subr.mxu0 0.0
    %487 = vmatpush1.msra.mxu0 %v470
    %488 = vmatprep.subr.mxu0 0.0
    %489 = vmatpush1.msra.mxu0 %v471
    %490 = vmatprep.subr.mxu0 0.0
    %491 = vmatpush1.msra.mxu0 %v472
    %492 = vmatprep.subr.mxu0 0.0
    %493 = vmatpush1.msra.mxu0 %v473
    %494 = vmatprep.subr.mxu0 0.0
    %495 = vmatpush1.msra.mxu0 %v474
    %496 = vmatprep.subr.mxu0 0.0
    %497 = vmatpush1.msra.mxu0 %v475
    %498 = vmatprep.subr.mxu0 0.0
    %499 = vmatpush1.msra.mxu0 %v476
    %500 = vmatprep.subr.mxu0 0.0
    %501 = vmatpush1.msra.mxu0 %v477
    %502 = vmatprep.subr.mxu0 0.0
    %503 = vmatpush1.msra.mxu0 %v478
    %504 = vmatprep.subr.mxu0 0.0
    %505 = vmatpush1.msra.mxu0 %v479
    %506 = vmatprep.subr.mxu0 0.0
    %507 = vmatpush1.msra.mxu0 %v480
    %508 = vmatprep.subr.mxu0 0.0
    %509 = vmatpush1.msra.mxu0 %v481
    %510 = vmatprep.subr.mxu0 0.0
    %511 = vmatpush1.msra.mxu0 %v482
    %512 = vmatprep.subr.mxu0 0.0
    %513 = vmatpush1.msra.mxu0 %v483
    %514 = vmatprep.subr.mxu0 0.0
    %515 = vmatpush1.msra.mxu0 %v484
    %516 = vmatprep.subr.mxu0 0.0
    %517 = vmatpush1.msra.mxu0 %v485
    %518 = vmatprep.subr.mxu0 0.0
    %519 = vmatpush1.msra.mxu0 0.0
    %520 = vmatprep.subr.mxu0 0.0
    %521 = vmatpush1.msra.mxu0 0.0
    %522 = vmatprep.subr.mxu0 0.0
    %523 = vmatpush1.msra.mxu0 0.0
    %524 = vmatprep.subr.mxu0 0.0
    %525 = vmatpush1.msra.mxu0 0.0
    %526 = vmatprep.subr.mxu0 0.0
    %527 = vmatpush1.msra.mxu0 0.0
    %528 = vmatprep.subr.mxu0 0.0
    %529 = vmatpush1.msra.mxu0 0.0
    %530 = vmatprep.subr.mxu0 0.0
    %531 = vmatpush1.msra.mxu0 0.0
    %532 = vmatprep.subr.mxu0 0.0
    %533 = vmatpush1.msra.mxu0 0.0
    %534 = vmatprep.subr.mxu0 0.0
    %535 = vmatpush1.msra.mxu0 0.0
    %536 = vmatprep.subr.mxu0 0.0
    %537 = vmatpush1.msra.mxu0 0.0
    %538 = vmatprep.subr.mxu0 0.0
    %539 = vmatpush1.msra.mxu0 0.0
    %540 = vmatprep.subr.mxu0 0.0
    %541 = vmatpush1.msra.mxu0 0.0
    %542 = vmatprep.subr.mxu0 0.0
    %543 = vmatpush1.msra.mxu0 0.0
    %544 = vmatprep.subr.mxu0 0.0
    %545 = vmatpush1.msra.mxu0 0.0
    %546 = vmatprep.subr.mxu0 0.0
    %547 = vmatpush1.msra.mxu0 0.0
    %548 = vmatprep.subr.mxu0 0.0
    %549 = vmatpush1.msra.mxu0 0.0
    %550 = vmatprep.mubr.f32.mxu0 0.0
    %551 = vmatmul.mubr.f32.gmra.mrb[0].mxu0 %v465
    %v552 = vpop.f32.mrb[0].mxu0
    %v553 = vadd.f32 0.0, %v552
    %v554 = vpop.f32.mrb[0].mxu0
    %555 = vdwg.mxu0
    %v556 = vadd.f32 %v469, %v553
    %v557 = vtanh.pop %v556
    %s558 = scalar_lea.vmem [#allocation3], 32
    %559 = vst [vmem:[%s558] sm:$0xff] %v557
    %s560 = scalar_lea.vmem [#allocation4], 40
    %v561 = vld [vmem:[%s560] sm:$0xff]
    %v562 = vld [vmem:[#allocation9] sm:$0xff]
    %v563 = vld [vmem:[#allocation9 + $0x8] sm:$0xff]
    %v564 = vld [vmem:[#allocation9 + $0x10] sm:$0xff]
    %v565 = vld [vmem:[#allocation9 + $0x18] sm:$0xff]
    %v566 = vld [vmem:[#allocation9 + $0x20] sm:$0xff]
    %v567 = vld [vmem:[#allocation9 + $0x28] sm:$0xff]
    %v568 = vld [vmem:[#allocation9 + $0x30] sm:$0xff]
    %v569 = vld [vmem:[#allocation9 + $0x38] sm:$0xff]
    %v570 = vld [vmem:[#allocation9 + $0x40] sm:$0xff]
    %v571 = vld [vmem:[#allocation9 + $0x48] sm:$0xff]
    %v572 = vld [vmem:[#allocation9 + $0x50] sm:$0xff]
    %v573 = vld [vmem:[#allocation9 + $0x58] sm:$0xff]
    %v574 = vld [vmem:[#allocation9 + $0x60] sm:$0xff]
    %v575 = vld [vmem:[#allocation9 + $0x68] sm:$0xff]
    %v576 = vld [vmem:[#allocation9 + $0x70] sm:$0xff]
    %v577 = vld [vmem:[#allocation9 + $0x78] sm:$0xff]
    %578 = vmatprep.subr.mxu0 0.0
    %579 = vmatpush1.msra.mxu0 %v562
    %580 = vmatprep.subr.mxu0 0.0
    %581 = vmatpush1.msra.mxu0 %v563
    %582 = vmatprep.subr.mxu0 0.0
    %583 = vmatpush1.msra.mxu0 %v564
    %584 = vmatprep.subr.mxu0 0.0
    %585 = vmatpush1.msra.mxu0 %v565
    %586 = vmatprep.subr.mxu0 0.0
    %587 = vmatpush1.msra.mxu0 %v566
    %588 = vmatprep.subr.mxu0 0.0
    %589 = vmatpush1.msra.mxu0 %v567
    %590 = vmatprep.subr.mxu0 0.0
    %591 = vmatpush1.msra.mxu0 %v568
    %592 = vmatprep.subr.mxu0 0.0
    %593 = vmatpush1.msra.mxu0 %v569
    %594 = vmatprep.subr.mxu0 0.0
    %595 = vmatpush1.msra.mxu0 %v570
    %596 = vmatprep.subr.mxu0 0.0
    %597 = vmatpush1.msra.mxu0 %v571
    %598 = vmatprep.subr.mxu0 0.0
    %599 = vmatpush1.msra.mxu0 %v572
    %600 = vmatprep.subr.mxu0 0.0
    %601 = vmatpush1.msra.mxu0 %v573
    %602 = vmatprep.subr.mxu0 0.0
    %603 = vmatpush1.msra.mxu0 %v574
    %604 = vmatprep.subr.mxu0 0.0
    %605 = vmatpush1.msra.mxu0 %v575
    %606 = vmatprep.subr.mxu0 0.0
    %607 = vmatpush1.msra.mxu0 %v576
    %608 = vmatprep.subr.mxu0 0.0
    %609 = vmatpush1.msra.mxu0 %v577
    %610 = vmatprep.subr.mxu0 0.0
    %611 = vmatpush1.msra.mxu0 0.0
    %612 = vmatprep.subr.mxu0 0.0
    %613 = vmatpush1.msra.mxu0 0.0
    %614 = vmatprep.subr.mxu0 0.0
    %615 = vmatpush1.msra.mxu0 0.0
    %616 = vmatprep.subr.mxu0 0.0
    %617 = vmatpush1.msra.mxu0 0.0
    %618 = vmatprep.subr.mxu0 0.0
    %619 = vmatpush1.msra.mxu0 0.0
    %620 = vmatprep.subr.mxu0 0.0
    %621 = vmatpush1.msra.mxu0 0.0
    %622 = vmatprep.subr.mxu0 0.0
    %623 = vmatpush1.msra.mxu0 0.0
    %624 = vmatprep.subr.mxu0 0.0
    %625 = vmatpush1.msra.mxu0 0.0
    %626 = vmatprep.subr.mxu0 0.0
    %627 = vmatpush1.msra.mxu0 0.0
    %628 = vmatprep.subr.mxu0 0.0
    %629 = vmatpush1.msra.mxu0 0.0
    %630 = vmatprep.subr.mxu0 0.0
    %631 = vmatpush1.msra.mxu0 0.0
    %632 = vmatprep.subr.mxu0 0.0
    %633 = vmatpush1.msra.mxu0 0.0
    %634 = vmatprep.subr.mxu0 0.0
    %635 = vmatpush1.msra.mxu0 0.0
    %636 = vmatprep.subr.mxu0 0.0
    %637 = vmatpush1.msra.mxu0 0.0
    %638 = vmatprep.subr.mxu0 0.0
    %639 = vmatpush1.msra.mxu0 0.0
    %640 = vmatprep.subr.mxu0 0.0
    %641 = vmatpush1.msra.mxu0 0.0
    %642 = vmatprep.mubr.f32.mxu0 0.0
    %643 = vmatmul.mubr.f32.gmra.mrb[0].mxu0 %v557
    %v644 = vpop.f32.mrb[0].mxu0
    %v645 = vadd.f32 0.0, %v644
    %v646 = vpop.f32.mrb[0].mxu0
    %647 = vdwg.mxu0
    %v648 = vadd.f32 %v561, %v645
    %v649 = vtanh.pop %v648
    %s650 = scalar_lea.vmem [#allocation3], 40
    %651 = vst [vmem:[%s650] sm:$0xff] %v649
    %s652 = scalar_lea.vmem [#allocation4], 48
    %v653 = vld [vmem:[%s652] sm:$0xff]
    %v654 = vld [vmem:[#allocation9] sm:$0xff]
    %v655 = vld [vmem:[#allocation9 + $0x8] sm:$0xff]
    %v656 = vld [vmem:[#allocation9 + $0x10] sm:$0xff]
    %v657 = vld [vmem:[#allocation9 + $0x18] sm:$0xff]
    %v658 = vld [vmem:[#allocation9 + $0x20] sm:$0xff]
    %v659 = vld [vmem:[#allocation9 + $0x28] sm:$0xff]
    %v660 = vld [vmem:[#allocation9 + $0x30] sm:$0xff]
    %v661 = vld [vmem:[#allocation9 + $0x38] sm:$0xff]
    %v662 = vld [vmem:[#allocation9 + $0x40] sm:$0xff]
    %v663 = vld [vmem:[#allocation9 + $0x48] sm:$0xff]
    %v664 = vld [vmem:[#allocation9 + $0x50] sm:$0xff]
    %v665 = vld [vmem:[#allocation9 + $0x58] sm:$0xff]
    %v666 = vld [vmem:[#allocation9 + $0x60] sm:$0xff]
    %v667 = vld [vmem:[#allocation9 + $0x68] sm:$0xff]
    %v668 = vld [vmem:[#allocation9 + $0x70] sm:$0xff]
    %v669 = vld [vmem:[#allocation9 + $0x78] sm:$0xff]
    %670 = vmatprep.subr.mxu0 0.0
    %671 = vmatpush1.msra.mxu0 %v654
    %672 = vmatprep.subr.mxu0 0.0
    %673 = vmatpush1.msra.mxu0 %v655
    %674 = vmatprep.subr.mxu0 0.0
    %675 = vmatpush1.msra.mxu0 %v656
    %676 = vmatprep.subr.mxu0 0.0
    %677 = vmatpush1.msra.mxu0 %v657
    %678 = vmatprep.subr.mxu0 0.0
    %679 = vmatpush1.msra.mxu0 %v658
    %680 = vmatprep.subr.mxu0 0.0
    %681 = vmatpush1.msra.mxu0 %v659
    %682 = vmatprep.subr.mxu0 0.0
    %683 = vmatpush1.msra.mxu0 %v660
    %684 = vmatprep.subr.mxu0 0.0
    %685 = vmatpush1.msra.mxu0 %v661
    %686 = vmatprep.subr.mxu0 0.0
    %687 = vmatpush1.msra.mxu0 %v662
    %688 = vmatprep.subr.mxu0 0.0
    %689 = vmatpush1.msra.mxu0 %v663
    %690 = vmatprep.subr.mxu0 0.0
    %691 = vmatpush1.msra.mxu0 %v664
    %692 = vmatprep.subr.mxu0 0.0
    %693 = vmatpush1.msra.mxu0 %v665
    %694 = vmatprep.subr.mxu0 0.0
    %695 = vmatpush1.msra.mxu0 %v666
    %696 = vmatprep.subr.mxu0 0.0
    %697 = vmatpush1.msra.mxu0 %v667
    %698 = vmatprep.subr.mxu0 0.0
    %699 = vmatpush1.msra.mxu0 %v668
    %700 = vmatprep.subr.mxu0 0.0
    %701 = vmatpush1.msra.mxu0 %v669
    %702 = vmatprep.subr.mxu0 0.0
    %703 = vmatpush1.msra.mxu0 0.0
    %704 = vmatprep.subr.mxu0 0.0
    %705 = vmatpush1.msra.mxu0 0.0
    %706 = vmatprep.subr.mxu0 0.0
    %707 = vmatpush1.msra.mxu0 0.0
    %708 = vmatprep.subr.mxu0 0.0
    %709 = vmatpush1.msra.mxu0 0.0
    %710 = vmatprep.subr.mxu0 0.0
    %711 = vmatpush1.msra.mxu0 0.0
    %712 = vmatprep.subr.mxu0 0.0
    %713 = vmatpush1.msra.mxu0 0.0
    %714 = vmatprep.subr.mxu0 0.0
    %715 = vmatpush1.msra.mxu0 0.0
    %716 = vmatprep.subr.mxu0 0.0
    %717 = vmatpush1.msra.mxu0 0.0
    %718 = vmatprep.subr.mxu0 0.0
    %719 = vmatpush1.msra.mxu0 0.0
    %720 = vmatprep.subr.mxu0 0.0
    %721 = vmatpush1.msra.mxu0 0.0
    %722 = vmatprep.subr.mxu0 0.0
    %723 = vmatpush1.msra.mxu0 0.0
    %724 = vmatprep.subr.mxu0 0.0
    %725 = vmatpush1.msra.mxu0 0.0
    %726 = vmatprep.subr.mxu0 0.0
    %727 = vmatpush1.msra.mxu0 0.0
    %728 = vmatprep.subr.mxu0 0.0
    %729 = vmatpush1.msra.mxu0 0.0
    %730 = vmatprep.subr.mxu0 0.0
    %731 = vmatpush1.msra.mxu0 0.0
    %732 = vmatprep.subr.mxu0 0.0
    %733 = vmatpush1.msra.mxu0 0.0
    %734 = vmatprep.mubr.f32.mxu0 0.0
    %735 = vmatmul.mubr.f32.gmra.mrb[0].mxu0 %v649
    %v736 = vpop.f32.mrb[0].mxu0
    %v737 = vadd.f32 0.0, %v736
    %v738 = vpop.f32.mrb[0].mxu0
    %739 = vdwg.mxu0
    %v740 = vadd.f32 %v653, %v737
    %v741 = vtanh.pop %v740
    %s742 = scalar_lea.vmem [#allocation3], 48
    %743 = vst [vmem:[%s742] sm:$0xff] %v741
    %s744 = scalar_lea.vmem [#allocation4], 56
    %v745 = vld [vmem:[%s744] sm:$0xff]
    %v746 = vld [vmem:[#allocation9] sm:$0xff]
    %v747 = vld [vmem:[#allocation9 + $0x8] sm:$0xff]
    %v748 = vld [vmem:[#allocation9 + $0x10] sm:$0xff]
    %v749 = vld [vmem:[#allocation9 + $0x18] sm:$0xff]
    %v750 = vld [vmem:[#allocation9 + $0x20] sm:$0xff]
    %v751 = vld [vmem:[#allocation9 + $0x28] sm:$0xff]
    %v752 = vld [vmem:[#allocation9 + $0x30] sm:$0xff]
    %v753 = vld [vmem:[#allocation9 + $0x38] sm:$0xff]
    %v754 = vld [vmem:[#allocation9 + $0x40] sm:$0xff]
    %v755 = vld [vmem:[#allocation9 + $0x48] sm:$0xff]
    %v756 = vld [vmem:[#allocation9 + $0x50] sm:$0xff]
    %v757 = vld [vmem:[#allocation9 + $0x58] sm:$0xff]
    %v758 = vld [vmem:[#allocation9 + $0x60] sm:$0xff]
    %v759 = vld [vmem:[#allocation9 + $0x68] sm:$0xff]
    %v760 = vld [vmem:[#allocation9 + $0x70] sm:$0xff]
    %v761 = vld [vmem:[#allocation9 + $0x78] sm:$0xff]
    %762 = vmatprep.subr.mxu0 0.0
    %763 = vmatpush1.msra.mxu0 %v746
    %764 = vmatprep.subr.mxu0 0.0
    %765 = vmatpush1.msra.mxu0 %v747
    %766 = vmatprep.subr.mxu0 0.0
    %767 = vmatpush1.msra.mxu0 %v748
    %768 = vmatprep.subr.mxu0 0.0
    %769 = vmatpush1.msra.mxu0 %v749
    %770 = vmatprep.subr.mxu0 0.0
    %771 = vmatpush1.msra.mxu0 %v750
    %772 = vmatprep.subr.mxu0 0.0
    %773 = vmatpush1.msra.mxu0 %v751
    %774 = vmatprep.subr.mxu0 0.0
    %775 = vmatpush1.msra.mxu0 %v752
    %776 = vmatprep.subr.mxu0 0.0
    %777 = vmatpush1.msra.mxu0 %v753
    %778 = vmatprep.subr.mxu0 0.0
    %779 = vmatpush1.msra.mxu0 %v754
    %780 = vmatprep.subr.mxu0 0.0
    %781 = vmatpush1.msra.mxu0 %v755
    %782 = vmatprep.subr.mxu0 0.0
    %783 = vmatpush1.msra.mxu0 %v756
    %784 = vmatprep.subr.mxu0 0.0
    %785 = vmatpush1.msra.mxu0 %v757
    %786 = vmatprep.subr.mxu0 0.0
    %787 = vmatpush1.msra.mxu0 %v758
    %788 = vmatprep.subr.mxu0 0.0
    %789 = vmatpush1.msra.mxu0 %v759
    %790 = vmatprep.subr.mxu0 0.0
    %791 = vmatpush1.msra.mxu0 %v760
    %792 = vmatprep.subr.mxu0 0.0
    %793 = vmatpush1.msra.mxu0 %v761
    %794 = vmatprep.subr.mxu0 0.0
    %795 = vmatpush1.msra.mxu0 0.0
    %796 = vmatprep.subr.mxu0 0.0
    %797 = vmatpush1.msra.mxu0 0.0
    %798 = vmatprep.subr.mxu0 0.0
    %799 = vmatpush1.msra.mxu0 0.0
    %800 = vmatprep.subr.mxu0 0.0
    %801 = vmatpush1.msra.mxu0 0.0
    %802 = vmatprep.subr.mxu0 0.0
    %803 = vmatpush1.msra.mxu0 0.0
    %804 = vmatprep.subr.mxu0 0.0
    %805 = vmatpush1.msra.mxu0 0.0
    %806 = vmatprep.subr.mxu0 0.0
    %807 = vmatpush1.msra.mxu0 0.0
    %808 = vmatprep.subr.mxu0 0.0
    %809 = vmatpush1.msra.mxu0 0.0
    %810 = vmatprep.subr.mxu0 0.0
    %811 = vmatpush1.msra.mxu0 0.0
    %812 = vmatprep.subr.mxu0 0.0
    %813 = vmatpush1.msra.mxu0 0.0
    %814 = vmatprep.subr.mxu0 0.0
    %815 = vmatpush1.msra.mxu0 0.0
    %816 = vmatprep.subr.mxu0 0.0
    %817 = vmatpush1.msra.mxu0 0.0
    %818 = vmatprep.subr.mxu0 0.0
    %819 = vmatpush1.msra.mxu0 0.0
    %820 = vmatprep.subr.mxu0 0.0
    %821 = vmatpush1.msra.mxu0 0.0
    %822 = vmatprep.subr.mxu0 0.0
    %823 = vmatpush1.msra.mxu0 0.0
    %824 = vmatprep.subr.mxu0 0.0
    %825 = vmatpush1.msra.mxu0 0.0
    %826 = vmatprep.mubr.f32.mxu0 0.0
    %827 = vmatmul.mubr.f32.gmra.mrb[0].mxu0 %v741
    %v828 = vpop.f32.mrb[0].mxu0
    %v829 = vadd.f32 0.0, %v828
    %v830 = vpop.f32.mrb[0].mxu0
    %831 = vdwg.mxu0
    %v832 = vadd.f32 %v745, %v829
    %v833 = vtanh.pop %v832
    %s834 = scalar_lea.vmem [#allocation3], 56
    %835 = vst [vmem:[%s834] sm:$0xff] %v833
    %836 = vst [vmem:[#allocation2] sm:$0xff] %v833
    %v837 = vld [vmem:[#allocation3] sm:$0xff]
    %v838 = vld [vmem:[#allocation3 + $0x8] sm:$0xff]
    %v839 = vld [vmem:[#allocation3 + $0x10] sm:$0xff]
    %v840 = vld [vmem:[#allocation3 + $0x18] sm:$0xff]
    %v841 = vld [vmem:[#allocation3 + $0x20] sm:$0xff]
    %v842 = vld [vmem:[#allocation3 + $0x28] sm:$0xff]
    %v843 = vld [vmem:[#allocation3 + $0x30] sm:$0xff]
    %v844 = vld [vmem:[#allocation3 + $0x38] sm:$0xff]
    %v845 = vld [vmem:[#allocation7] sm:$0xff]
    %v846 = vld [vmem:[#allocation7 + $0x8] sm:$0xff]
    %v847 = vld [vmem:[#allocation7 + $0x10] sm:$0xff]
    %v848 = vld [vmem:[#allocation7 + $0x18] sm:$0xff]
    %v849 = vld [vmem:[#allocation7 + $0x20] sm:$0xff]
    %v850 = vld [vmem:[#allocation7 + $0x28] sm:$0xff]
    %v851 = vld [vmem:[#allocation7 + $0x30] sm:$0xff]
    %v852 = vld [vmem:[#allocation7 + $0x38] sm:$0xff]
    %v853 = vld [vmem:[#allocation7 + $0x40] sm:$0xff]
    %v854 = vld [vmem:[#allocation7 + $0x48] sm:$0xff]
    %v855 = vld [vmem:[#allocation7 + $0x50] sm:$0xff]
    %v856 = vld [vmem:[#allocation7 + $0x58] sm:$0xff]
    %v857 = vld [vmem:[#allocation7 + $0x60] sm:$0xff]
    %v858 = vld [vmem:[#allocation7 + $0x68] sm:$0xff]
    %v859 = vld [vmem:[#allocation7 + $0x70] sm:$0xff]
    %v860 = vld [vmem:[#allocation7 + $0x78] sm:$0xff]
    %v861 = vld [vmem:[%s2] sm:$0x1]
    %v863 = vlaneseq
    %v864 = vshrl.u32 %v863, 7
    %v865 = vsub.s32 0, %v864
    %v866 = vrot.slane %v861, %v865
    %868 = vmatprep.subr.mxu0 0.0
    %869 = vmatpush1.msra.mxu0 %v845
    %870 = vmatprep.subr.mxu0 0.0
    %871 = vmatpush1.msra.mxu0 %v846
    %872 = vmatprep.subr.mxu0 0.0
    %873 = vmatpush1.msra.mxu0 %v847
    %874 = vmatprep.subr.mxu0 0.0
    %875 = vmatpush1.msra.mxu0 %v848
    %876 = vmatprep.subr.mxu0 0.0
    %877 = vmatpush1.msra.mxu0 %v849
    %878 = vmatprep.subr.mxu0 0.0
    %879 = vmatpush1.msra.mxu0 %v850
    %880 = vmatprep.subr.mxu0 0.0
    %881 = vmatpush1.msra.mxu0 %v851
    %882 = vmatprep.subr.mxu0 0.0
    %883 = vmatpush1.msra.mxu0 %v852
    %884 = vmatprep.subr.mxu0 0.0
    %885 = vmatpush1.msra.mxu0 %v853
    %886 = vmatprep.subr.mxu0 0.0
    %887 = vmatpush1.msra.mxu0 %v854
    %888 = vmatprep.subr.mxu0 0.0
    %889 = vmatpush1.msra.mxu0 %v855
    %890 = vmatprep.subr.mxu0 0.0
    %891 = vmatpush1.msra.mxu0 %v856
    %892 = vmatprep.subr.mxu0 0.0
    %893 = vmatpush1.msra.mxu0 %v857
    %894 = vmatprep.subr.mxu0 0.0
    %895 = vmatpush1.msra.mxu0 %v858
    %896 = vmatprep.subr.mxu0 0.0
    %897 = vmatpush1.msra.mxu0 %v859
    %898 = vmatprep.subr.mxu0 0.0
    %899 = vmatpush1.msra.mxu0 %v860
    %900 = vmatprep.subr.mxu0 0.0
    %901 = vmatpush1.msra.mxu0 0.0
    %902 = vmatprep.subr.mxu0 0.0
    %903 = vmatpush1.msra.mxu0 0.0
    %904 = vmatprep.subr.mxu0 0.0
    %905 = vmatpush1.msra.mxu0 0.0
    %906 = vmatprep.subr.mxu0 0.0
    %907 = vmatpush1.msra.mxu0 0.0
    %908 = vmatprep.subr.mxu0 0.0
    %909 = vmatpush1.msra.mxu0 0.0
    %910 = vmatprep.subr.mxu0 0.0
    %911 = vmatpush1.msra.mxu0 0.0
    %912 = vmatprep.subr.mxu0 0.0
    %913 = vmatpush1.msra.mxu0 0.0
    %914 = vmatprep.subr.mxu0 0.0
    %915 = vmatpush1.msra.mxu0 0.0
    %916 = vmatprep.subr.mxu0 0.0
    %917 = vmatpush1.msra.mxu0 0.0
    %918 = vmatprep.subr.mxu0 0.0
    %919 = vmatpush1.msra.mxu0 0.0
    %920 = vmatprep.subr.mxu0 0.0
    %921 = vmatpush1.msra.mxu0 0.0
    %922 = vmatprep.subr.mxu0 0.0
    %923 = vmatpush1.msra.mxu0 0.0
    %924 = vmatprep.subr.mxu0 0.0
    %925 = vmatpush1.msra.mxu0 0.0
    %926 = vmatprep.subr.mxu0 0.0
    %927 = vmatpush1.msra.mxu0 0.0
    %928 = vmatprep.subr.mxu0 0.0
    %929 = vmatpush1.msra.mxu0 0.0
    %930 = vmatprep.subr.mxu0 0.0
    %931 = vmatpush1.msra.mxu0 0.0
    %932 = vmatprep.mubr.f32.mxu0 0.0
    %933 = vmatmul.mubr.f32.gmra.mrb[0].mxu0 %v837
    %v934 = vpop.f32.mrb[0].mxu0
    %v935 = vadd.f32 %v866, %v934
    %v936 = vpop.f32.mrb[0].mxu0
    %937 = vmatprep.mubr.f32.mxu0 0.0
    %938 = vmatmul.mubr.f32.gmra.mrb[0].mxu0 %v838
    %v939 = vpop.f32.mrb[0].mxu0
    %v940 = vadd.f32 %v866, %v939
    %v941 = vpop.f32.mrb[0].mxu0
    %942 = vmatprep.mubr.f32.mxu0 0.0
    %943 = vmatmul.mubr.f32.gmra.mrb[0].mxu0 %v839
    %v944 = vpop.f32.mrb[0].mxu0
    %v945 = vadd.f32 %v866, %v944
    %v946 = vpop.f32.mrb[0].mxu0
    %947 = vmatprep.mubr.f32.mxu0 0.0
    %948 = vmatmul.mubr.f32.gmra.mrb[0].mxu0 %v840
    %v949 = vpop.f32.mrb[0].mxu0
    %v950 = vadd.f32 %v866, %v949
    %v951 = vpop.f32.mrb[0].mxu0
    %952 = vmatprep.mubr.f32.mxu0 0.0
    %953 = vmatmul.mubr.f32.gmra.mrb[0].mxu0 %v841
    %v954 = vpop.f32.mrb[0].mxu0
    %v955 = vadd.f32 %v866, %v954
    %v956 = vpop.f32.mrb[0].mxu0
    %957 = vmatprep.mubr.f32.mxu0 0.0
    %958 = vmatmul.mubr.f32.gmra.mrb[0].mxu0 %v842
    %v959 = vpop.f32.mrb[0].mxu0
    %v960 = vadd.f32 %v866, %v959
    %v961 = vpop.f32.mrb[0].mxu0
    %962 = vmatprep.mubr.f32.mxu0 0.0
    %963 = vmatmul.mubr.f32.gmra.mrb[0].mxu0 %v843
    %v964 = vpop.f32.mrb[0].mxu0
    %v965 = vadd.f32 %v866, %v964
    %v966 = vpop.f32.mrb[0].mxu0
    %967 = vmatprep.mubr.f32.mxu0 0.0
    %968 = vmatmul.mubr.f32.gmra.mrb[0].mxu0 %v844
    %v969 = vpop.f32.mrb[0].mxu0
    %v970 = vadd.f32 %v866, %v969
    %v971 = vpop.f32.mrb[0].mxu0
    %972 = vdwg.mxu0
    %973 = vst [vmem:[#allocation3] sm:$0xff] %v935
    %974 = vst [vmem:[#allocation3 + $0x8] sm:$0xff] %v940
    %975 = vst [vmem:[#allocation3 + $0x10] sm:$0xff] %v945
    %976 = vst [vmem:[#allocation3 + $0x18] sm:$0xff] %v950
    %977 = vst [vmem:[#allocation3 + $0x20] sm:$0xff] %v955
    %978 = vst [vmem:[#allocation3 + $0x28] sm:$0xff] %v960
    %979 = vst [vmem:[#allocation3 + $0x30] sm:$0xff] %v965
    %980 = vst [vmem:[#allocation3 + $0x38] sm:$0xff] %v970
    %s981 = scalar_lea.vmem [#allocation2], 8
    %v982 = vld [vmem:[%s981] sm:$0xff]
    %v983 = vld [vmem:[#allocation3] sm:$0xff]
    %v984 = vld [vmem:[#allocation10] sm:$0xff]
    %v985 = vld [vmem:[#allocation10 + $0x8] sm:$0xff]
    %v986 = vld [vmem:[#allocation10 + $0x10] sm:$0xff]
    %v987 = vld [vmem:[#allocation10 + $0x18] sm:$0xff]
    %v988 = vld [vmem:[#allocation10 + $0x20] sm:$0xff]
    %v989 = vld [vmem:[#allocation10 + $0x28] sm:$0xff]
    %v990 = vld [vmem:[#allocation10 + $0x30] sm:$0xff]
    %v991 = vld [vmem:[#allocation10 + $0x38] sm:$0xff]
    %v992 = vld [vmem:[#allocation10 + $0x40] sm:$0xff]
    %v993 = vld [vmem:[#allocation10 + $0x48] sm:$0xff]
    %v994 = vld [vmem:[#allocation10 + $0x50] sm:$0xff]
    %v995 = vld [vmem:[#allocation10 + $0x58] sm:$0xff]
    %v996 = vld [vmem:[#allocation10 + $0x60] sm:$0xff]
    %v997 = vld [vmem:[#allocation10 + $0x68] sm:$0xff]
    %v998 = vld [vmem:[#allocation10 + $0x70] sm:$0xff]
    %v999 = vld [vmem:[#allocation10 + $0x78] sm:$0xff]
    %1000 = vmatprep.subr.mxu0 0.0
    %1001 = vmatpush1.msra.mxu0 %v984
    %1002 = vmatprep.subr.mxu0 0.0
    %1003 = vmatpush1.msra.mxu0 %v985
    %1004 = vmatprep.subr.mxu0 0.0
    %1005 = vmatpush1.msra.mxu0 %v986
    %1006 = vmatprep.subr.mxu0 0.0
    %1007 = vmatpush1.msra.mxu0 %v987
    %1008 = vmatprep.subr.mxu0 0.0
    %1009 = vmatpush1.msra.mxu0 %v988
    %1010 = vmatprep.subr.mxu0 0.0
    %1011 = vmatpush1.msra.mxu0 %v989
    %1012 = vmatprep.subr.mxu0 0.0
    %1013 = vmatpush1.msra.mxu0 %v990
    %1014 = vmatprep.subr.mxu0 0.0
    %1015 = vmatpush1.msra.mxu0 %v991
    %1016 = vmatprep.subr.mxu0 0.0
    %1017 = vmatpush1.msra.mxu0 %v992
    %1018 = vmatprep.subr.mxu0 0.0
    %1019 = vmatpush1.msra.mxu0 %v993
    %1020 = vmatprep.subr.mxu0 0.0
    %1021 = vmatpush1.msra.mxu0 %v994
    %1022 = vmatprep.subr.mxu0 0.0
    %1023 = vmatpush1.msra.mxu0 %v995
    %1024 = vmatprep.subr.mxu0 0.0
    %1025 = vmatpush1.msra.mxu0 %v996
    %1026 = vmatprep.subr.mxu0 0.0
    %1027 = vmatpush1.msra.mxu0 %v997
    %1028 = vmatprep.subr.mxu0 0.0
    %1029 = vmatpush1.msra.mxu0 %v998
    %1030 = vmatprep.subr.mxu0 0.0
    %1031 = vmatpush1.msra.mxu0 %v999
    %1032 = vmatprep.subr.mxu0 0.0
    %1033 = vmatpush1.msra.mxu0 0.0
    %1034 = vmatprep.subr.mxu0 0.0
    %1035 = vmatpush1.msra.mxu0 0.0
    %1036 = vmatprep.subr.mxu0 0.0
    %1037 = vmatpush1.msra.mxu0 0.0
    %1038 = vmatprep.subr.mxu0 0.0
    %1039 = vmatpush1.msra.mxu0 0.0
    %1040 = vmatprep.subr.mxu0 0.0
    %1041 = vmatpush1.msra.mxu0 0.0
    %1042 = vmatprep.subr.mxu0 0.0
    %1043 = vmatpush1.msra.mxu0 0.0
    %1044 = vmatprep.subr.mxu0 0.0
    %1045 = vmatpush1.msra.mxu0 0.0
    %1046 = vmatprep.subr.mxu0 0.0
    %1047 = vmatpush1.msra.mxu0 0.0
    %1048 = vmatprep.subr.mxu0 0.0
    %1049 = vmatpush1.msra.mxu0 0.0
    %1050 = vmatprep.subr.mxu0 0.0
    %1051 = vmatpush1.msra.mxu0 0.0
    %1052 = vmatprep.subr.mxu0 0.0
    %1053 = vmatpush1.msra.mxu0 0.0
    %1054 = vmatprep.subr.mxu0 0.0
    %1055 = vmatpush1.msra.mxu0 0.0
    %1056 = vmatprep.subr.mxu0 0.0
    %1057 = vmatpush1.msra.mxu0 0.0
    %1058 = vmatprep.subr.mxu0 0.0
    %1059 = vmatpush1.msra.mxu0 0.0
    %1060 = vmatprep.subr.mxu0 0.0
    %1061 = vmatpush1.msra.mxu0 0.0
    %1062 = vmatprep.subr.mxu0 0.0
    %1063 = vmatpush1.msra.mxu0 0.0
    %1064 = vmatprep.mubr.f32.mxu0 0.0
    %1065 = vmatmul.mubr.f32.gmra.mrb[0].mxu0 %v982
    %v1066 = vpop.f32.mrb[0].mxu0
    %v1067 = vadd.f32 0.0, %v1066
    %v1068 = vpop.f32.mrb[0].mxu0
    %1069 = vdwg.mxu0
    %v1070 = vadd.f32 %v983, %v1067
    %v1071 = vtanh.pop %v1070
    %v1072 = vld [vmem:[%s282] sm:$0xff]
    %1073 = vmatprep.subr.mxu0 0.0
    %1074 = vmatpush1.msra.mxu0 %v984
    %1075 = vmatprep.subr.mxu0 0.0
    %1076 = vmatpush1.msra.mxu0 %v985
    %1077 = vmatprep.subr.mxu0 0.0
    %1078 = vmatpush1.msra.mxu0 %v986
    %1079 = vmatprep.subr.mxu0 0.0
    %1080 = vmatpush1.msra.mxu0 %v987
    %1081 = vmatprep.subr.mxu0 0.0
    %1082 = vmatpush1.msra.mxu0 %v988
    %1083 = vmatprep.subr.mxu0 0.0
    %1084 = vmatpush1.msra.mxu0 %v989
    %1085 = vmatprep.subr.mxu0 0.0
    %1086 = vmatpush1.msra.mxu0 %v990
    %1087 = vmatprep.subr.mxu0 0.0
    %1088 = vmatpush1.msra.mxu0 %v991
    %1089 = vmatprep.subr.mxu0 0.0
    %1090 = vmatpush1.msra.mxu0 %v992
    %1091 = vmatprep.subr.mxu0 0.0
    %1092 = vmatpush1.msra.mxu0 %v993
    %1093 = vmatprep.subr.mxu0 0.0
    %1094 = vmatpush1.msra.mxu0 %v994
    %1095 = vmatprep.subr.mxu0 0.0
    %1096 = vmatpush1.msra.mxu0 %v995
    %1097 = vmatprep.subr.mxu0 0.0
    %1098 = vmatpush1.msra.mxu0 %v996
    %1099 = vmatprep.subr.mxu0 0.0
    %1100 = vmatpush1.msra.mxu0 %v997
    %1101 = vmatprep.subr.mxu0 0.0
    %1102 = vmatpush1.msra.mxu0 %v998
    %1103 = vmatprep.subr.mxu0 0.0
    %1104 = vmatpush1.msra.mxu0 %v999
    %1105 = vmatprep.subr.mxu0 0.0
    %1106 = vmatpush1.msra.mxu0 0.0
    %1107 = vmatprep.subr.mxu0 0.0
    %1108 = vmatpush1.msra.mxu0 0.0
    %1109 = vmatprep.subr.mxu0 0.0
    %1110 = vmatpush1.msra.mxu0 0.0
    %1111 = vmatprep.subr.mxu0 0.0
    %1112 = vmatpush1.msra.mxu0 0.0
    %1113 = vmatprep.subr.mxu0 0.0
    %1114 = vmatpush1.msra.mxu0 0.0
    %1115 = vmatprep.subr.mxu0 0.0
    %1116 = vmatpush1.msra.mxu0 0.0
    %1117 = vmatprep.subr.mxu0 0.0
    %1118 = vmatpush1.msra.mxu0 0.0
    %1119 = vmatprep.subr.mxu0 0.0
    %1120 = vmatpush1.msra.mxu0 0.0
    %1121 = vmatprep.subr.mxu0 0.0
    %1122 = vmatpush1.msra.mxu0 0.0
    %1123 = vmatprep.subr.mxu0 0.0
    %1124 = vmatpush1.msra.mxu0 0.0
    %1125 = vmatprep.subr.mxu0 0.0
    %1126 = vmatpush1.msra.mxu0 0.0
    %1127 = vmatprep.subr.mxu0 0.0
    %1128 = vmatpush1.msra.mxu0 0.0
    %1129 = vmatprep.subr.mxu0 0.0
    %1130 = vmatpush1.msra.mxu0 0.0
    %1131 = vmatprep.subr.mxu0 0.0
    %1132 = vmatpush1.msra.mxu0 0.0
    %1133 = vmatprep.subr.mxu0 0.0
    %1134 = vmatpush1.msra.mxu0 0.0
    %1135 = vmatprep.subr.mxu0 0.0
    %1136 = vmatpush1.msra.mxu0 0.0
    %1137 = vmatprep.mubr.f32.mxu0 0.0
    %1138 = vmatmul.mubr.f32.gmra.mrb[0].mxu0 %v1071
    %v1139 = vpop.f32.mrb[0].mxu0
    %v1140 = vadd.f32 0.0, %v1139
    %v1141 = vpop.f32.mrb[0].mxu0
    %1142 = vdwg.mxu0
    %v1143 = vadd.f32 %v1072, %v1140
    %v1144 = vtanh.pop %v1143
    %v1145 = vld [vmem:[%s374] sm:$0xff]
    %1146 = vmatprep.subr.mxu0 0.0
    %1147 = vmatpush1.msra.mxu0 %v984
    %1148 = vmatprep.subr.mxu0 0.0
    %1149 = vmatpush1.msra.mxu0 %v985
    %1150 = vmatprep.subr.mxu0 0.0
    %1151 = vmatpush1.msra.mxu0 %v986
    %1152 = vmatprep.subr.mxu0 0.0
    %1153 = vmatpush1.msra.mxu0 %v987
    %1154 = vmatprep.subr.mxu0 0.0
    %1155 = vmatpush1.msra.mxu0 %v988
    %1156 = vmatprep.subr.mxu0 0.0
    %1157 = vmatpush1.msra.mxu0 %v989
    %1158 = vmatprep.subr.mxu0 0.0
    %1159 = vmatpush1.msra.mxu0 %v990
    %1160 = vmatprep.subr.mxu0 0.0
    %1161 = vmatpush1.msra.mxu0 %v991
    %1162 = vmatprep.subr.mxu0 0.0
    %1163 = vmatpush1.msra.mxu0 %v992
    %1164 = vmatprep.subr.mxu0 0.0
    %1165 = vmatpush1.msra.mxu0 %v993
    %1166 = vmatprep.subr.mxu0 0.0
    %1167 = vmatpush1.msra.mxu0 %v994
    %1168 = vmatprep.subr.mxu0 0.0
    %1169 = vmatpush1.msra.mxu0 %v995
    %1170 = vmatprep.subr.mxu0 0.0
    %1171 = vmatpush1.msra.mxu0 %v996
    %1172 = vmatprep.subr.mxu0 0.0
    %1173 = vmatpush1.msra.mxu0 %v997
    %1174 = vmatprep.subr.mxu0 0.0
    %1175 = vmatpush1.msra.mxu0 %v998
    %1176 = vmatprep.subr.mxu0 0.0
    %1177 = vmatpush1.msra.mxu0 %v999
    %1178 = vmatprep.subr.mxu0 0.0
    %1179 = vmatpush1.msra.mxu0 0.0
    %1180 = vmatprep.subr.mxu0 0.0
    %1181 = vmatpush1.msra.mxu0 0.0
    %1182 = vmatprep.subr.mxu0 0.0
    %1183 = vmatpush1.msra.mxu0 0.0
    %1184 = vmatprep.subr.mxu0 0.0
    %1185 = vmatpush1.msra.mxu0 0.0
    %1186 = vmatprep.subr.mxu0 0.0
    %1187 = vmatpush1.msra.mxu0 0.0
    %1188 = vmatprep.subr.mxu0 0.0
    %1189 = vmatpush1.msra.mxu0 0.0
    %1190 = vmatprep.subr.mxu0 0.0
    %1191 = vmatpush1.msra.mxu0 0.0
    %1192 = vmatprep.subr.mxu0 0.0
    %1193 = vmatpush1.msra.mxu0 0.0
    %1194 = vmatprep.subr.mxu0 0.0
    %1195 = vmatpush1.msra.mxu0 0.0
    %1196 = vmatprep.subr.mxu0 0.0
    %1197 = vmatpush1.msra.mxu0 0.0
    %1198 = vmatprep.subr.mxu0 0.0
    %1199 = vmatpush1.msra.mxu0 0.0
    %1200 = vmatprep.subr.mxu0 0.0
    %1201 = vmatpush1.msra.mxu0 0.0
    %1202 = vmatprep.subr.mxu0 0.0
    %1203 = vmatpush1.msra.mxu0 0.0
    %1204 = vmatprep.subr.mxu0 0.0
    %1205 = vmatpush1.msra.mxu0 0.0
    %1206 = vmatprep.subr.mxu0 0.0
    %1207 = vmatpush1.msra.mxu0 0.0
    %1208 = vmatprep.subr.mxu0 0.0
    %1209 = vmatpush1.msra.mxu0 0.0
    %1210 = vmatprep.mubr.f32.mxu0 0.0
    %1211 = vmatmul.mubr.f32.gmra.mrb[0].mxu0 %v1144
    %v1212 = vpop.f32.mrb[0].mxu0
    %v1213 = vadd.f32 0.0, %v1212
    %v1214 = vpop.f32.mrb[0].mxu0
    %1215 = vdwg.mxu0
    %v1216 = vadd.f32 %v1145, %v1213
    %v1217 = vtanh.pop %v1216
    %v1218 = vld [vmem:[%s466] sm:$0xff]
    %1219 = vmatprep.subr.mxu0 0.0
    %1220 = vmatpush1.msra.mxu0 %v984
    %1221 = vmatprep.subr.mxu0 0.0
    %1222 = vmatpush1.msra.mxu0 %v985
    %1223 = vmatprep.subr.mxu0 0.0
    %1224 = vmatpush1.msra.mxu0 %v986
    %1225 = vmatprep.subr.mxu0 0.0
    %1226 = vmatpush1.msra.mxu0 %v987
    %1227 = vmatprep.subr.mxu0 0.0
    %1228 = vmatpush1.msra.mxu0 %v988
    %1229 = vmatprep.subr.mxu0 0.0
    %1230 = vmatpush1.msra.mxu0 %v989
    %1231 = vmatprep.subr.mxu0 0.0
    %1232 = vmatpush1.msra.mxu0 %v990
    %1233 = vmatprep.subr.mxu0 0.0
    %1234 = vmatpush1.msra.mxu0 %v991
    %1235 = vmatprep.subr.mxu0 0.0
    %1236 = vmatpush1.msra.mxu0 %v992
    %1237 = vmatprep.subr.mxu0 0.0
    %1238 = vmatpush1.msra.mxu0 %v993
    %1239 = vmatprep.subr.mxu0 0.0
    %1240 = vmatpush1.msra.mxu0 %v994
    %1241 = vmatprep.subr.mxu0 0.0
    %1242 = vmatpush1.msra.mxu0 %v995
    %1243 = vmatprep.subr.mxu0 0.0
    %1244 = vmatpush1.msra.mxu0 %v996
    %1245 = vmatprep.subr.mxu0 0.0
    %1246 = vmatpush1.msra.mxu0 %v997
    %1247 = vmatprep.subr.mxu0 0.0
    %1248 = vmatpush1.msra.mxu0 %v998
    %1249 = vmatprep.subr.mxu0 0.0
    %1250 = vmatpush1.msra.mxu0 %v999
    %1251 = vmatprep.subr.mxu0 0.0
    %1252 = vmatpush1.msra.mxu0 0.0
    %1253 = vmatprep.subr.mxu0 0.0
    %1254 = vmatpush1.msra.mxu0 0.0
    %1255 = vmatprep.subr.mxu0 0.0
    %1256 = vmatpush1.msra.mxu0 0.0
    %1257 = vmatprep.subr.mxu0 0.0
    %1258 = vmatpush1.msra.mxu0 0.0
    %1259 = vmatprep.subr.mxu0 0.0
    %1260 = vmatpush1.msra.mxu0 0.0
    %1261 = vmatprep.subr.mxu0 0.0
    %1262 = vmatpush1.msra.mxu0 0.0
    %1263 = vmatprep.subr.mxu0 0.0
    %1264 = vmatpush1.msra.mxu0 0.0
    %1265 = vmatprep.subr.mxu0 0.0
    %1266 = vmatpush1.msra.mxu0 0.0
    %1267 = vmatprep.subr.mxu0 0.0
    %1268 = vmatpush1.msra.mxu0 0.0
    %1269 = vmatprep.subr.mxu0 0.0
    %1270 = vmatpush1.msra.mxu0 0.0
    %1271 = vmatprep.subr.mxu0 0.0
    %1272 = vmatpush1.msra.mxu0 0.0
    %1273 = vmatprep.subr.mxu0 0.0
    %1274 = vmatpush1.msra.mxu0 0.0
    %1275 = vmatprep.subr.mxu0 0.0
    %1276 = vmatpush1.msra.mxu0 0.0
    %1277 = vmatprep.subr.mxu0 0.0
    %1278 = vmatpush1.msra.mxu0 0.0
    %1279 = vmatprep.subr.mxu0 0.0
    %1280 = vmatpush1.msra.mxu0 0.0
    %1281 = vmatprep.subr.mxu0 0.0
    %1282 = vmatpush1.msra.mxu0 0.0
    %1283 = vmatprep.mubr.f32.mxu0 0.0
    %1284 = vmatmul.mubr.f32.gmra.mrb[0].mxu0 %v1217
    %v1285 = vpop.f32.mrb[0].mxu0
    %v1286 = vadd.f32 0.0, %v1285
    %v1287 = vpop.f32.mrb[0].mxu0
    %1288 = vdwg.mxu0
    %v1289 = vadd.f32 %v1218, %v1286
    %v1290 = vtanh.pop %v1289
    %v1291 = vld [vmem:[%s558] sm:$0xff]
    %1292 = vmatprep.subr.mxu0 0.0
    %1293 = vmatpush1.msra.mxu0 %v984
    %1294 = vmatprep.subr.mxu0 0.0
    %1295 = vmatpush1.msra.mxu0 %v985
    %1296 = vmatprep.subr.mxu0 0.0
    %1297 = vmatpush1.msra.mxu0 %v986
    %1298 = vmatprep.subr.mxu0 0.0
    %1299 = vmatpush1.msra.mxu0 %v987
    %1300 = vmatprep.subr.mxu0 0.0
    %1301 = vmatpush1.msra.mxu0 %v988
    %1302 = vmatprep.subr.mxu0 0.0
    %1303 = vmatpush1.msra.mxu0 %v989
    %1304 = vmatprep.subr.mxu0 0.0
    %1305 = vmatpush1.msra.mxu0 %v990
    %1306 = vmatprep.subr.mxu0 0.0
    %1307 = vmatpush1.msra.mxu0 %v991
    %1308 = vmatprep.subr.mxu0 0.0
    %1309 = vmatpush1.msra.mxu0 %v992
    %1310 = vmatprep.subr.mxu0 0.0
    %1311 = vmatpush1.msra.mxu0 %v993
    %1312 = vmatprep.subr.mxu0 0.0
    %1313 = vmatpush1.msra.mxu0 %v994
    %1314 = vmatprep.subr.mxu0 0.0
    %1315 = vmatpush1.msra.mxu0 %v995
    %1316 = vmatprep.subr.mxu0 0.0
    %1317 = vmatpush1.msra.mxu0 %v996
    %1318 = vmatprep.subr.mxu0 0.0
    %1319 = vmatpush1.msra.mxu0 %v997
    %1320 = vmatprep.subr.mxu0 0.0
    %1321 = vmatpush1.msra.mxu0 %v998
    %1322 = vmatprep.subr.mxu0 0.0
    %1323 = vmatpush1.msra.mxu0 %v999
    %1324 = vmatprep.subr.mxu0 0.0
    %1325 = vmatpush1.msra.mxu0 0.0
    %1326 = vmatprep.subr.mxu0 0.0
    %1327 = vmatpush1.msra.mxu0 0.0
    %1328 = vmatprep.subr.mxu0 0.0
    %1329 = vmatpush1.msra.mxu0 0.0
    %1330 = vmatprep.subr.mxu0 0.0
    %1331 = vmatpush1.msra.mxu0 0.0
    %1332 = vmatprep.subr.mxu0 0.0
    %1333 = vmatpush1.msra.mxu0 0.0
    %1334 = vmatprep.subr.mxu0 0.0
    %1335 = vmatpush1.msra.mxu0 0.0
    %1336 = vmatprep.subr.mxu0 0.0
    %1337 = vmatpush1.msra.mxu0 0.0
    %1338 = vmatprep.subr.mxu0 0.0
    %1339 = vmatpush1.msra.mxu0 0.0
    %1340 = vmatprep.subr.mxu0 0.0
    %1341 = vmatpush1.msra.mxu0 0.0
    %1342 = vmatprep.subr.mxu0 0.0
    %1343 = vmatpush1.msra.mxu0 0.0
    %1344 = vmatprep.subr.mxu0 0.0
    %1345 = vmatpush1.msra.mxu0 0.0
    %1346 = vmatprep.subr.mxu0 0.0
    %1347 = vmatpush1.msra.mxu0 0.0
    %1348 = vmatprep.subr.mxu0 0.0
    %1349 = vmatpush1.msra.mxu0 0.0
    %1350 = vmatprep.subr.mxu0 0.0
    %1351 = vmatpush1.msra.mxu0 0.0
    %1352 = vmatprep.subr.mxu0 0.0
    %1353 = vmatpush1.msra.mxu0 0.0
    %1354 = vmatprep.subr.mxu0 0.0
    %1355 = vmatpush1.msra.mxu0 0.0
    %1356 = vmatprep.mubr.f32.mxu0 0.0
    %1357 = vmatmul.mubr.f32.gmra.mrb[0].mxu0 %v1290
    %v1358 = vpop.f32.mrb[0].mxu0
    %v1359 = vadd.f32 0.0, %v1358
    %v1360 = vpop.f32.mrb[0].mxu0
    %1361 = vdwg.mxu0
    %v1362 = vadd.f32 %v1291, %v1359
    %v1363 = vtanh.pop %v1362
    %v1364 = vld [vmem:[%s650] sm:$0xff]
    %1365 = vmatprep.subr.mxu0 0.0
    %1366 = vmatpush1.msra.mxu0 %v984
    %1367 = vmatprep.subr.mxu0 0.0
    %1368 = vmatpush1.msra.mxu0 %v985
    %1369 = vmatprep.subr.mxu0 0.0
    %1370 = vmatpush1.msra.mxu0 %v986
    %1371 = vmatprep.subr.mxu0 0.0
    %1372 = vmatpush1.msra.mxu0 %v987
    %1373 = vmatprep.subr.mxu0 0.0
    %1374 = vmatpush1.msra.mxu0 %v988
    %1375 = vmatprep.subr.mxu0 0.0
    %1376 = vmatpush1.msra.mxu0 %v989
    %1377 = vmatprep.subr.mxu0 0.0
    %1378 = vmatpush1.msra.mxu0 %v990
    %1379 = vmatprep.subr.mxu0 0.0
    %1380 = vmatpush1.msra.mxu0 %v991
    %1381 = vmatprep.subr.mxu0 0.0
    %1382 = vmatpush1.msra.mxu0 %v992
    %1383 = vmatprep.subr.mxu0 0.0
    %1384 = vmatpush1.msra.mxu0 %v993
    %1385 = vmatprep.subr.mxu0 0.0
    %1386 = vmatpush1.msra.mxu0 %v994
    %1387 = vmatprep.subr.mxu0 0.0
    %1388 = vmatpush1.msra.mxu0 %v995
    %1389 = vmatprep.subr.mxu0 0.0
    %1390 = vmatpush1.msra.mxu0 %v996
    %1391 = vmatprep.subr.mxu0 0.0
    %1392 = vmatpush1.msra.mxu0 %v997
    %1393 = vmatprep.subr.mxu0 0.0
    %1394 = vmatpush1.msra.mxu0 %v998
    %1395 = vmatprep.subr.mxu0 0.0
    %1396 = vmatpush1.msra.mxu0 %v999
    %1397 = vmatprep.subr.mxu0 0.0
    %1398 = vmatpush1.msra.mxu0 0.0
    %1399 = vmatprep.subr.mxu0 0.0
    %1400 = vmatpush1.msra.mxu0 0.0
    %1401 = vmatprep.subr.mxu0 0.0
    %1402 = vmatpush1.msra.mxu0 0.0
    %1403 = vmatprep.subr.mxu0 0.0
    %1404 = vmatpush1.msra.mxu0 0.0
    %1405 = vmatprep.subr.mxu0 0.0
    %1406 = vmatpush1.msra.mxu0 0.0
    %1407 = vmatprep.subr.mxu0 0.0
    %1408 = vmatpush1.msra.mxu0 0.0
    %1409 = vmatprep.subr.mxu0 0.0
    %1410 = vmatpush1.msra.mxu0 0.0
    %1411 = vmatprep.subr.mxu0 0.0
    %1412 = vmatpush1.msra.mxu0 0.0
    %1413 = vmatprep.subr.mxu0 0.0
    %1414 = vmatpush1.msra.mxu0 0.0
    %1415 = vmatprep.subr.mxu0 0.0
    %1416 = vmatpush1.msra.mxu0 0.0
    %1417 = vmatprep.subr.mxu0 0.0
    %1418 = vmatpush1.msra.mxu0 0.0
    %1419 = vmatprep.subr.mxu0 0.0
    %1420 = vmatpush1.msra.mxu0 0.0
    %1421 = vmatprep.subr.mxu0 0.0
    %1422 = vmatpush1.msra.mxu0 0.0
    %1423 = vmatprep.subr.mxu0 0.0
    %1424 = vmatpush1.msra.mxu0 0.0
    %1425 = vmatprep.subr.mxu0 0.0
    %1426 = vmatpush1.msra.mxu0 0.0
    %1427 = vmatprep.subr.mxu0 0.0
    %1428 = vmatpush1.msra.mxu0 0.0
    %1429 = vmatprep.mubr.f32.mxu0 0.0
    %1430 = vmatmul.mubr.f32.gmra.mrb[0].mxu0 %v1363
    %v1431 = vpop.f32.mrb[0].mxu0
    %v1432 = vadd.f32 0.0, %v1431
    %v1433 = vpop.f32.mrb[0].mxu0
    %1434 = vdwg.mxu0
    %v1435 = vadd.f32 %v1364, %v1432
    %v1436 = vtanh.pop %v1435
    %v1437 = vld [vmem:[%s742] sm:$0xff]
    %1438 = vmatprep.subr.mxu0 0.0
    %1439 = vmatpush1.msra.mxu0 %v984
    %1440 = vmatprep.subr.mxu0 0.0
    %1441 = vmatpush1.msra.mxu0 %v985
    %1442 = vmatprep.subr.mxu0 0.0
    %1443 = vmatpush1.msra.mxu0 %v986
    %1444 = vmatprep.subr.mxu0 0.0
    %1445 = vmatpush1.msra.mxu0 %v987
    %1446 = vmatprep.subr.mxu0 0.0
    %1447 = vmatpush1.msra.mxu0 %v988
    %1448 = vmatprep.subr.mxu0 0.0
    %1449 = vmatpush1.msra.mxu0 %v989
    %1450 = vmatprep.subr.mxu0 0.0
    %1451 = vmatpush1.msra.mxu0 %v990
    %1452 = vmatprep.subr.mxu0 0.0
    %1453 = vmatpush1.msra.mxu0 %v991
    %1454 = vmatprep.subr.mxu0 0.0
    %1455 = vmatpush1.msra.mxu0 %v992
    %1456 = vmatprep.subr.mxu0 0.0
    %1457 = vmatpush1.msra.mxu0 %v993
    %1458 = vmatprep.subr.mxu0 0.0
    %1459 = vmatpush1.msra.mxu0 %v994
    %1460 = vmatprep.subr.mxu0 0.0
    %1461 = vmatpush1.msra.mxu0 %v995
    %1462 = vmatprep.subr.mxu0 0.0
    %1463 = vmatpush1.msra.mxu0 %v996
    %1464 = vmatprep.subr.mxu0 0.0
    %1465 = vmatpush1.msra.mxu0 %v997
    %1466 = vmatprep.subr.mxu0 0.0
    %1467 = vmatpush1.msra.mxu0 %v998
    %1468 = vmatprep.subr.mxu0 0.0
    %1469 = vmatpush1.msra.mxu0 %v999
    %1470 = vmatprep.subr.mxu0 0.0
    %1471 = vmatpush1.msra.mxu0 0.0
    %1472 = vmatprep.subr.mxu0 0.0
    %1473 = vmatpush1.msra.mxu0 0.0
    %1474 = vmatprep.subr.mxu0 0.0
    %1475 = vmatpush1.msra.mxu0 0.0
    %1476 = vmatprep.subr.mxu0 0.0
    %1477 = vmatpush1.msra.mxu0 0.0
    %1478 = vmatprep.subr.mxu0 0.0
    %1479 = vmatpush1.msra.mxu0 0.0
    %1480 = vmatprep.subr.mxu0 0.0
    %1481 = vmatpush1.msra.mxu0 0.0
    %1482 = vmatprep.subr.mxu0 0.0
    %1483 = vmatpush1.msra.mxu0 0.0
    %1484 = vmatprep.subr.mxu0 0.0
    %1485 = vmatpush1.msra.mxu0 0.0
    %1486 = vmatprep.subr.mxu0 0.0
    %1487 = vmatpush1.msra.mxu0 0.0
    %1488 = vmatprep.subr.mxu0 0.0
    %1489 = vmatpush1.msra.mxu0 0.0
    %1490 = vmatprep.subr.mxu0 0.0
    %1491 = vmatpush1.msra.mxu0 0.0
    %1492 = vmatprep.subr.mxu0 0.0
    %1493 = vmatpush1.msra.mxu0 0.0
    %1494 = vmatprep.subr.mxu0 0.0
    %1495 = vmatpush1.msra.mxu0 0.0
    %1496 = vmatprep.subr.mxu0 0.0
    %1497 = vmatpush1.msra.mxu0 0.0
    %1498 = vmatprep.subr.mxu0 0.0
    %1499 = vmatpush1.msra.mxu0 0.0
    %1500 = vmatprep.subr.mxu0 0.0
    %1501 = vmatpush1.msra.mxu0 0.0
    %1502 = vmatprep.mubr.f32.mxu0 0.0
    %1503 = vmatmul.mubr.f32.gmra.mrb[0].mxu0 %v1436
    %v1504 = vpop.f32.mrb[0].mxu0
    %v1505 = vadd.f32 0.0, %v1504
    %v1506 = vpop.f32.mrb[0].mxu0
    %1507 = vdwg.mxu0
    %v1508 = vadd.f32 %v1437, %v1505
    %v1509 = vtanh.pop %v1508
    %v1510 = vld [vmem:[%s834] sm:$0xff]
    %1511 = vmatprep.subr.mxu0 0.0
    %1512 = vmatpush1.msra.mxu0 %v984
    %1513 = vmatprep.subr.mxu0 0.0
    %1514 = vmatpush1.msra.mxu0 %v985
    %1515 = vmatprep.subr.mxu0 0.0
    %1516 = vmatpush1.msra.mxu0 %v986
    %1517 = vmatprep.subr.mxu0 0.0
    %1518 = vmatpush1.msra.mxu0 %v987
    %1519 = vmatprep.subr.mxu0 0.0
    %1520 = vmatpush1.msra.mxu0 %v988
    %1521 = vmatprep.subr.mxu0 0.0
    %1522 = vmatpush1.msra.mxu0 %v989
    %1523 = vmatprep.subr.mxu0 0.0
    %1524 = vmatpush1.msra.mxu0 %v990
    %1525 = vmatprep.subr.mxu0 0.0
    %1526 = vmatpush1.msra.mxu0 %v991
    %1527 = vmatprep.subr.mxu0 0.0
    %1528 = vmatpush1.msra.mxu0 %v992
    %1529 = vmatprep.subr.mxu0 0.0
    %1530 = vmatpush1.msra.mxu0 %v993
    %1531 = vmatprep.subr.mxu0 0.0
    %1532 = vmatpush1.msra.mxu0 %v994
    %1533 = vmatprep.subr.mxu0 0.0
    %1534 = vmatpush1.msra.mxu0 %v995
    %1535 = vmatprep.subr.mxu0 0.0
    %1536 = vmatpush1.msra.mxu0 %v996
    %1537 = vmatprep.subr.mxu0 0.0
    %1538 = vmatpush1.msra.mxu0 %v997
    %1539 = vmatprep.subr.mxu0 0.0
    %1540 = vmatpush1.msra.mxu0 %v998
    %1541 = vmatprep.subr.mxu0 0.0
    %1542 = vmatpush1.msra.mxu0 %v999
    %1543 = vmatprep.subr.mxu0 0.0
    %1544 = vmatpush1.msra.mxu0 0.0
    %1545 = vmatprep.subr.mxu0 0.0
    %1546 = vmatpush1.msra.mxu0 0.0
    %1547 = vmatprep.subr.mxu0 0.0
    %1548 = vmatpush1.msra.mxu0 0.0
    %1549 = vmatprep.subr.mxu0 0.0
    %1550 = vmatpush1.msra.mxu0 0.0
    %1551 = vmatprep.subr.mxu0 0.0
    %1552 = vmatpush1.msra.mxu0 0.0
    %1553 = vmatprep.subr.mxu0 0.0
    %1554 = vmatpush1.msra.mxu0 0.0
    %1555 = vmatprep.subr.mxu0 0.0
    %1556 = vmatpush1.msra.mxu0 0.0
    %1557 = vmatprep.subr.mxu0 0.0
    %1558 = vmatpush1.msra.mxu0 0.0
    %1559 = vmatprep.subr.mxu0 0.0
    %1560 = vmatpush1.msra.mxu0 0.0
    %1561 = vmatprep.subr.mxu0 0.0
    %1562 = vmatpush1.msra.mxu0 0.0
    %1563 = vmatprep.subr.mxu0 0.0
    %1564 = vmatpush1.msra.mxu0 0.0
    %1565 = vmatprep.subr.mxu0 0.0
    %1566 = vmatpush1.msra.mxu0 0.0
    %1567 = vmatprep.subr.mxu0 0.0
    %1568 = vmatpush1.msra.mxu0 0.0
    %1569 = vmatprep.subr.mxu0 0.0
    %1570 = vmatpush1.msra.mxu0 0.0
    %1571 = vmatprep.subr.mxu0 0.0
    %1572 = vmatpush1.msra.mxu0 0.0
    %1573 = vmatprep.subr.mxu0 0.0
    %1574 = vmatpush1.msra.mxu0 0.0
    %1575 = vmatprep.mubr.f32.mxu0 0.0
    %1576 = vmatmul.mubr.f32.gmra.mrb[0].mxu0 %v1509
    %v1577 = vpop.f32.mrb[0].mxu0
    %v1578 = vadd.f32 0.0, %v1577
    %v1579 = vpop.f32.mrb[0].mxu0
    %1580 = vdwg.mxu0
    %v1581 = vadd.f32 %v1510, %v1578
    %v1582 = vtanh.pop %v1581
    %1583 = vst [vmem:[%s981] sm:$0xff] %v1582
    // Predicated region
    $region54: #{tpu_custom_call.1} parent=1 // pred_check
      %p1584 = pneg %p95
    $region55: #{tpu_custom_call.1} parent=1 // pred_check_branch
      %1586 = sbr.rel (%p1584) target = $region57
    $region56: #{tpu_custom_call.1} parent=1 // pred_region
      %v1587 = vld [vmem:[#allocation12] sm:$0xff]
      %v1588 = vld [vmem:[#allocation12 + $0x8] sm:$0xff]
      %v1589 = vld [vmem:[#allocation12 + $0x10] sm:$0xff]
      %v1590 = vld [vmem:[#allocation12 + $0x18] sm:$0xff]
      %v1591 = vld [vmem:[#allocation12 + $0x20] sm:$0xff]
      %v1592 = vld [vmem:[#allocation12 + $0x28] sm:$0xff]
      %v1593 = vld [vmem:[#allocation12 + $0x30] sm:$0xff]
      %v1594 = vld [vmem:[#allocation12 + $0x38] sm:$0xff]
      %v1595 = vld [vmem:[#allocation12 + $0x40] sm:$0xff]
      %v1596 = vld [vmem:[#allocation12 + $0x48] sm:$0xff]
      %v1597 = vld [vmem:[#allocation12 + $0x50] sm:$0xff]
      %v1598 = vld [vmem:[#allocation12 + $0x58] sm:$0xff]
      %v1599 = vld [vmem:[#allocation12 + $0x60] sm:$0xff]
      %v1600 = vld [vmem:[#allocation12 + $0x68] sm:$0xff]
      %v1601 = vld [vmem:[#allocation12 + $0x70] sm:$0xff]
      %v1602 = vld [vmem:[#allocation12 + $0x78] sm:$0xff]
      %v1603 = vld [vmem:[%s6] sm:$0x1]
      %v1605 = vlaneseq
      %v1606 = vshrl.u32 %v1605, 7
      %v1607 = vsub.s32 0, %v1606
      %v1608 = vrot.slane %v1603, %v1607
      %1610 = vmatprep.subr.mxu0 0.0
      %1611 = vmatpush1.msra.mxu0 %v1587
      %1612 = vmatprep.subr.mxu0 0.0
      %1613 = vmatpush1.msra.mxu0 %v1588
      %1614 = vmatprep.subr.mxu0 0.0
      %1615 = vmatpush1.msra.mxu0 %v1589
      %1616 = vmatprep.subr.mxu0 0.0
      %1617 = vmatpush1.msra.mxu0 %v1590
      %1618 = vmatprep.subr.mxu0 0.0
      %1619 = vmatpush1.msra.mxu0 %v1591
      %1620 = vmatprep.subr.mxu0 0.0
      %1621 = vmatpush1.msra.mxu0 %v1592
      %1622 = vmatprep.subr.mxu0 0.0
      %1623 = vmatpush1.msra.mxu0 %v1593
      %1624 = vmatprep.subr.mxu0 0.0
      %1625 = vmatpush1.msra.mxu0 %v1594
      %1626 = vmatprep.subr.mxu0 0.0
      %1627 = vmatpush1.msra.mxu0 %v1595
      %1628 = vmatprep.subr.mxu0 0.0
      %1629 = vmatpush1.msra.mxu0 %v1596
      %1630 = vmatprep.subr.mxu0 0.0
      %1631 = vmatpush1.msra.mxu0 %v1597
      %1632 = vmatprep.subr.mxu0 0.0
      %1633 = vmatpush1.msra.mxu0 %v1598
      %1634 = vmatprep.subr.mxu0 0.0
      %1635 = vmatpush1.msra.mxu0 %v1599
      %1636 = vmatprep.subr.mxu0 0.0
      %1637 = vmatpush1.msra.mxu0 %v1600
      %1638 = vmatprep.subr.mxu0 0.0
      %1639 = vmatpush1.msra.mxu0 %v1601
      %1640 = vmatprep.subr.mxu0 0.0
      %1641 = vmatpush1.msra.mxu0 %v1602
      %1642 = vmatprep.subr.mxu0 0.0
      %1643 = vmatpush1.msra.mxu0 0.0
      %1644 = vmatprep.subr.mxu0 0.0
      %1645 = vmatpush1.msra.mxu0 0.0
      %1646 = vmatprep.subr.mxu0 0.0
      %1647 = vmatpush1.msra.mxu0 0.0
      %1648 = vmatprep.subr.mxu0 0.0
      %1649 = vmatpush1.msra.mxu0 0.0
      %1650 = vmatprep.subr.mxu0 0.0
      %1651 = vmatpush1.msra.mxu0 0.0
      %1652 = vmatprep.subr.mxu0 0.0
      %1653 = vmatpush1.msra.mxu0 0.0
      %1654 = vmatprep.subr.mxu0 0.0
      %1655 = vmatpush1.msra.mxu0 0.0
      %1656 = vmatprep.subr.mxu0 0.0
      %1657 = vmatpush1.msra.mxu0 0.0
      %1658 = vmatprep.subr.mxu0 0.0
      %1659 = vmatpush1.msra.mxu0 0.0
      %1660 = vmatprep.subr.mxu0 0.0
      %1661 = vmatpush1.msra.mxu0 0.0
      %1662 = vmatprep.subr.mxu0 0.0
      %1663 = vmatpush1.msra.mxu0 0.0
      %1664 = vmatprep.subr.mxu0 0.0
      %1665 = vmatpush1.msra.mxu0 0.0
      %1666 = vmatprep.subr.mxu0 0.0
      %1667 = vmatpush1.msra.mxu0 0.0
      %1668 = vmatprep.subr.mxu0 0.0
      %1669 = vmatpush1.msra.mxu0 0.0
      %1670 = vmatprep.subr.mxu0 0.0
      %1671 = vmatpush1.msra.mxu0 0.0
      %1672 = vmatprep.subr.mxu0 0.0
      %1673 = vmatpush1.msra.mxu0 0.0
      %1674 = vmatprep.mubr.f32.mxu0 0.0
      %1675 = vmatmul.mubr.f32.gmra.mrb[0].mxu0 %v1582
      %v1676 = vpop.f32.mrb[0].mxu0
      %v1677 = vadd.f32 %v1608, %v1676
      %v1678 = vpop.f32.mrb[0].mxu0
      %1679 = vdwg.mxu0
      %1680 = vst [vmem:[#allocation13] sm:$0xff] %v1677
    $region57: #{tpu_custom_call.1} parent=1 // pred_fallthru
      _
    // Predicated region
    $region58: #{tpu_custom_call.1} parent=1 // pred_check
      _
    $region59: #{tpu_custom_call.1} parent=1 // pred_check_branch
      %1682 = sbr.rel (0) target = $region61
    $region60: #{tpu_custom_call.1} parent=1 // pred_region
      %s1684 = ssub.s32 128, 128
      %1685 = vsyncadd [#allocation6], %s1684
      %s1687 = sshll.u32 [#allocation13], 4
      %s1688 = int_to_ptr.vmem [resolvable:$true] %s1687
      %1690 = dma.vmem_to_hbm [thread:$0]  %s1688, 128, %s7, [#allocation6]
    $region61: #{tpu_custom_call.1} parent=1 // pred_fallthru
      _
    // Predicated region
    $region62: #{tpu_custom_call.1} parent=1 // pred_check
      _
    $region63: #{tpu_custom_call.1} parent=1 // pred_check_branch
      %1692 = sbr.rel (0) target = $region65
    $region64: #{tpu_custom_call.1} parent=1 // pred_region
      %1693 = dma.done [#allocation6], 128
    $region65: #{tpu_custom_call.1} parent=1 // pred_fallthru
      _
    %1694 = vsyncpa [#allocation5], 1
    %1695 = vsyncpa [#allocation8], 1
    %1696 = vsyncpa [#allocation11], 1
    %1697 = vsyncpa [#allocation6], 1

</llo_original>
